<compile_context>
chip_gen: v7x
topology: tpu7x:2x2x1
jax: 0.10.0
libtpu: 0.0.40
codegen_flags: <defaults>
</compile_context>

<pallas_src>
import functools

import jax
import jax.numpy as jnp
from jax.experimental import pallas as pl
from jax.experimental.pallas import tpu as pltpu


def _round_up(x, m):
    return ((x + m - 1) // m) * m


def _pad_to(a, shape):
    return jnp.pad(a, [(0, t - s) for s, t in zip(a.shape, shape)])


# ----------------------------------------------------------------------------
# Fused kernel: GCN layers -> global max pool -> ResBlock head -> out proj
# ----------------------------------------------------------------------------
def mol2spec_kernel(a_ref, x_ref, w0_ref, wmid_ref, b_all_ref,
                    bias_t_ref, gfeat_ref,
                    w1h_ref, w1g_ref, b1_ref,
                    w2h_ref, w2g_ref, b2h_ref, b2g_ref,
                    w3h_ref, w3g_ref, b3_ref,
                    out_ref,
                    h_scr, y_scr, pooled_scr,
                    *, n_layers, n_graphs, tm):
    L = pl.program_id(0)            # GCN layer index: 0 .. n_layers
    i = pl.program_id(1)            # node row-tile index
    n_tiles = pl.num_programs(1)
    last = n_layers                 # last GCN layer index

    # ---- per-layer setup (once per layer, at row tile 0): Y = H_prev @ W_L ----
    @pl.when((i == 0) & (L == 0))
    def _():
        y_scr[...] = jnp.dot(
            x_ref[...], w0_ref[...],
            preferred_element_type=jnp.float32).astype(y_scr.dtype)

    @pl.when((i == 0) & (L > 0))
    def _():
        l = jnp.maximum(L - 1, 0)
        y_scr[...] = jnp.dot(
            h_scr[...], wmid_ref[l],
            preferred_element_type=jnp.float32).astype(y_scr.dtype)

    @pl.when((i == 0) & (L == last))
    def _():
        pooled_scr[...] = jnp.full(pooled_scr.shape, -jnp.inf, pooled_scr.dtype)

    # ---- row tile of layer L: H_new[rows] = relu(A_hat[rows, :] @ Y + b_L) ----
    acc = jnp.dot(a_ref[...], y_scr[...], preferred_element_type=jnp.float32)
    b_l = b_all_ref[L]                              # [1, Hp] f32
    h_new = jnp.maximum(acc + b_l, 0.0)             # [TM, Hp] f32
    row0 = pl.multiple_of(i * tm, tm)
    h_scr[pl.ds(row0, tm), :] = h_new.astype(h_scr.dtype)

    # ---- running global_max_pool (only for the last GCN layer) ----
    @pl.when(L == last)
    def _():
        for b in range(n_graphs):                   # static unroll; B is small
            # additive mask bias: 0 for member nodes, -1e30 otherwise
            masked = h_new + bias_t_ref[:, b:b + 1]           # [TM, Hp]
            cand = jnp.max(masked, axis=0, keepdims=True)     # [1, Hp]
            pooled_scr[b:b + 1, :] = jnp.maximum(pooled_scr[b:b + 1, :], cand)

    # ---- head (ResBlock + final Linear), at the very last grid step ----
    @pl.when((L == last) & (i == n_tiles - 1))
    def _():
        pooled = pooled_scr[...]                    # [B, Hp] f32
        g = gfeat_ref[...]                          # [B, Gp] f32
        # TODO(synk): Dropout(p=0.1) is identity (eval-mode semantics).
        r = (jnp.dot(pooled, w1h_ref[...], preferred_element_type=jnp.float32)
             + jnp.dot(g, w1g_ref[...], preferred_element_type=jnp.float32)
             + b1_ref[...])
        r = r * jax.nn.sigmoid(r)                   # SiLU
        r2h = jnp.dot(r, w2h_ref[...], preferred_element_type=jnp.float32) + b2h_ref[...]
        r2g = jnp.dot(r, w2g_ref[...], preferred_element_type=jnp.float32) + b2g_ref[...]
        zh = pooled + r2h                           # residual add, split layout
        zg = g + r2g
        out_ref[...] = (jnp.dot(zh, w3h_ref[...], preferred_element_type=jnp.float32)
                        + jnp.dot(zg, w3g_ref[...], preferred_element_type=jnp.float32)
                        + b3_ref[...])


# ----------------------------------------------------------------------------
# Wrapper: padding / splitting / casting + pallas_call
# ----------------------------------------------------------------------------
def mol2spec_graph_forward(params, a_hat, x, pool_mask, frag_levels, adduct_feats):
    N, F = x.shape
    B = pool_mask.shape[0]
    H = params["w0"].shape[1]
    n_layers = params["wmid"].shape[0]
    P = params["w3"].shape[1]
    G = params["w1"].shape[0] - H                 # graph_feature_dim

    LANE = 128
    Hp = _round_up(H, LANE)
    Fp = _round_up(F, LANE)
    Gp = _round_up(G, LANE)
    Pp = _round_up(P, LANE)

    Np8 = _round_up(max(N, 8), 8)
    if Np8 >= 256:
        TM = 256
    elif Np8 >= 128:
        TM = 128
    else:
        TM = Np8
    Np = _round_up(Np8, TM)
    n_tiles = Np // TM

    # --- pad / split / cast params (pure layout work; could be done offline) ---
    w0 = _pad_to(params["w0"], (Fp, Hp)).astype(jnp.bfloat16)
    Lm = max(n_layers, 1)
    wmid = _pad_to(params["wmid"], (Lm, Hp, Hp)).astype(jnp.bfloat16)
    b_all = _pad_to(jnp.concatenate([params["b0"][None], params["bmid"]], axis=0),
                    (n_layers + 1, 1, Hp)).astype(jnp.float32)

    w1, w2, w3 = params["w1"], params["w2"], params["w3"]
    w1h = _pad_to(w1[:H], (Hp, Hp))
    w1g = _pad_to(w1[H:], (Gp, Hp))
    b1 = _pad_to(params["b1"], (1, Hp))
    w2h = _pad_to(w2[:, :H], (Hp, Hp))
    w2g = _pad_to(w2[:, H:], (Hp, Gp))
    b2h = _pad_to(params["b2"][:, :H], (1, Hp))
    b2g = _pad_to(params["b2"][:, H:], (1, Gp))
    w3h = _pad_to(w3[:H], (Hp, Pp))
    w3g = _pad_to(w3[H:], (Gp, Pp))
    b3 = _pad_to(params["b3"], (1, Pp))

    # --- pad / cast activations & graph-level features ---
    a_p = _pad_to(a_hat, (Np, Np)).astype(jnp.bfloat16)
    x_p = _pad_to(x, (Np, Fp)).astype(jnp.bfloat16)
    mask_p = _pad_to(pool_mask, (B, Np))
    # additive pooling bias, transposed to [Np, B] so node index is the sublane axis
    bias_t = jnp.where(mask_p.T > 0, 0.0, -1e30).astype(jnp.float32)
    frag = frag_levels.reshape(B, frag_levels.shape[0] // B)
    addu = adduct_feats.reshape(B, adduct_feats.shape[0] // B)
    gfeat = _pad_to(jnp.concatenate([frag, addu], axis=1), (B, Gp)).astype(jnp.float32)

    def resident(shape):
        return pl.BlockSpec(shape, lambda L, i, z=(0,) * len(shape): z)

    in_specs = [
        pl.BlockSpec((TM, Np), lambda L, i: (i, 0)),   # A_hat row tiles (streamed)
        resident(x_p.shape),
        resident(w0.shape),
        resident(wmid.shape),
        resident(b_all.shape),
        pl.BlockSpec((TM, B), lambda L, i: (i, 0)),    # pooling bias row tiles
        resident(gfeat.shape),
        resident(w1h.shape), resident(w1g.shape), resident(b1.shape),
        resident(w2h.shape), resident(w2g.shape), resident(b2h.shape), resident(b2g.shape),
        resident(w3h.shape), resident(w3g.shape), resident(b3.shape),
    ]

    out_padded = pl.pallas_call(
        functools.partial(mol2spec_kernel, n_layers=n_layers, n_graphs=B, tm=TM),
        out_shape=jax.ShapeDtypeStruct((B, Pp), jnp.float32),
        grid_spec=pltpu.PrefetchScalarGridSpec(
            num_scalar_prefetch=0,
            grid=(n_layers + 1, n_tiles),
            in_specs=in_specs,
            out_specs=pl.BlockSpec((B, Pp), lambda L, i: (0, 0)),
            scratch_shapes=[
                pltpu.VMEM((Np, Hp), jnp.bfloat16),    # h  : current activations
                pltpu.VMEM((Np, Hp), jnp.bfloat16),    # y  : h_prev @ W_L
                pltpu.VMEM((B, Hp), jnp.float32),      # running per-graph max pool
            ]),
        compiler_params=pltpu.CompilerParams(
            dimension_semantics=("arbitrary", "arbitrary"),
            vmem_limit_bytes=64 * 1024 * 1024),
    )(a_p, x_p, w0, wmid, b_all, bias_t, gfeat,
      w1h, w1g, b1, w2h, w2g, b2h, b2g, w3h, w3g, b3)

    return out_padded[:, :P]


# ----------------------------------------------------------------------------
# Glue: dense GCN-normalized adjacency, param init, pure-JAX reference
# ----------------------------------------------------------------------------
def build_normalized_adjacency(edge_index, num_nodes):
    a = jnp.zeros((num_nodes, num_nodes), jnp.float32)
    a = a.at[edge_index[1], edge_index[0]].set(1.0)    # message j -> i
    a = a + jnp.eye(num_nodes, dtype=jnp.float32)      # add self loops
    deg = jnp.sum(a, axis=1)
    d_inv_sqrt = jnp.where(deg > 0, 1.0 / jnp.sqrt(deg), 0.0)
    return d_inv_sqrt[:, None] * a * d_inv_sqrt[None, :]


def init_params(key, node_feature_dim, graph_feature_dim, prop_dim, hdim, n_layers):
    ks = jax.random.split(key, 8)
    d = hdim + graph_feature_dim

    def lin(k, fan_in, fan_out):
        s = 1.0 / jnp.sqrt(fan_in)
        return jax.random.uniform(k, (fan_in, fan_out), jnp.float32, -s, s)

    if n_layers > 0:
        s = 1.0 / jnp.sqrt(hdim)
        wmid = jax.random.uniform(ks[1], (n_layers, hdim, hdim), jnp.float32, -s, s)
        bmid = jnp.zeros((n_layers, 1, hdim), jnp.float32)
    else:
        wmid = jnp.zeros((0, hdim, hdim), jnp.float32)
        bmid = jnp.zeros((0, 1, hdim), jnp.float32)

    return {
        "w0": lin(ks[0], node_feature_dim, hdim),
        "b0": jnp.zeros((1, hdim), jnp.float32),
        "wmid": wmid,
        "bmid": bmid,
        "w1": lin(ks[2], d, hdim),
        "b1": jnp.zeros((1, hdim), jnp.float32),
        "w2": lin(ks[3], hdim, d),
        "b2": jnp.zeros((1, d), jnp.float32),
        "w3": lin(ks[4], d, prop_dim),
        "b3": jnp.zeros((1, prop_dim), jnp.float32),
    }


def reference_forward(params, a_hat, x, pool_mask, frag_levels, adduct_feats):
    h = jnp.maximum(a_hat @ (x @ params["w0"]) + params["b0"], 0.0)
    for l in range(params["wmid"].shape[0]):
        h = jnp.maximum(a_hat @ (h @ params["wmid"][l]) + params["bmid"][l], 0.0)
    B = pool_mask.shape[0]
    neg = jnp.where(pool_mask > 0, 0.0, -1e30)                 # [B, N]
    pooled = jnp.max(h[None, :, :] + neg[:, :, None], axis=1)  # [B, H]
    frag = frag_levels.reshape(B, -1)
    addu = adduct_feats.reshape(B, -1)
    z = jnp.concatenate([pooled, frag, addu], axis=1)
    r = z @ params["w1"] + params["b1"]
    r = r * jax.nn.sigmoid(r)
    r = r @ params["w2"] + params["b2"]
    z = z + r
    return z @ params["w3"] + params["b3"]


if __name__ == "__main__":
    node_feature_dim = 16
    hdim = 32
    n_layers = 2
    frag_dim = 5
    adduct_dim = 3
    graph_feature_dim = frag_dim + adduct_dim
    prop_dim = 10

    B = 2                 # graphs per batch
    N = 8                 # total nodes (4 per graph)

    key = jax.random.PRNGKey(0)
    k_par, k_x, k_f, k_a = jax.random.split(key, 4)

    params = init_params(k_par, node_feature_dim, graph_feature_dim,
                         prop_dim, hdim, n_layers)

    x = jax.random.normal(k_x, (N, node_feature_dim), jnp.float32)

    batch_vec = jnp.array([0, 0, 0, 0, 1, 1, 1, 1], jnp.int32)
    pool_mask = (batch_vec[None, :] == jnp.arange(B)[:, None]).astype(jnp.float32)

    src = jnp.array([0, 1, 1, 2, 2, 3, 3, 0,
                     4, 5, 5, 6, 6, 7, 7, 4], jnp.int32)
    dst = jnp.array([1, 0, 2, 1, 3, 2, 0, 3,
                     5, 4, 6, 5, 7, 6, 4, 7], jnp.int32)
    edge_index = jnp.stack([src, dst], axis=0)
    a_hat = build_normalized_adjacency(edge_index, N)

    frag_levels = jax.random.normal(k_f, (B * frag_dim,), jnp.float32)
    adduct_feats = jax.random.normal(k_a, (B * adduct_dim,), jnp.float32)

    out = mol2spec_graph_forward(params, a_hat, x, pool_mask,
                                 frag_levels, adduct_feats)
    out = jax.block_until_ready(out)
    assert out.shape == (B, prop_dim)

    ref = reference_forward(params, a_hat, x, pool_mask, frag_levels, adduct_feats)
    max_err = float(jnp.max(jnp.abs(out - ref)))
    # bf16 MXU operands in the GCN stack -> loose but meaningful tolerance
    assert max_err < 0.2, f"max abs error vs reference: {max_err}"
    print("KERNEL_OK")
</pallas_src>

<mosaic_0001>
module attributes {stable_mosaic.version = 11 : i64} {
  func.func @mol2spec_kernel(%arg0: i32, %arg1: i32, %arg2: memref<8x8xbf16, #tpu.memory_space<vmem>>, %arg3: memref<8x128xbf16, #tpu.memory_space<vmem>>, %arg4: memref<128x128xbf16, #tpu.memory_space<vmem>>, %arg5: memref<2x128x128xbf16, #tpu.memory_space<vmem>>, %arg6: memref<3x1x128xf32, #tpu.memory_space<vmem>>, %arg7: memref<8x2xf32, #tpu.memory_space<vmem>>, %arg8: memref<2x128xf32, #tpu.memory_space<vmem>>, %arg9: memref<128x128xf32, #tpu.memory_space<vmem>>, %arg10: memref<128x128xf32, #tpu.memory_space<vmem>>, %arg11: memref<1x128xf32, #tpu.memory_space<vmem>>, %arg12: memref<128x128xf32, #tpu.memory_space<vmem>>, %arg13: memref<128x128xf32, #tpu.memory_space<vmem>>, %arg14: memref<1x128xf32, #tpu.memory_space<vmem>>, %arg15: memref<1x128xf32, #tpu.memory_space<vmem>>, %arg16: memref<128x128xf32, #tpu.memory_space<vmem>>, %arg17: memref<128x128xf32, #tpu.memory_space<vmem>>, %arg18: memref<1x128xf32, #tpu.memory_space<vmem>>, %arg19: memref<2x128xf32, #tpu.memory_space<vmem>>, %arg20: memref<8x128xbf16, #tpu.memory_space<vmem>>, %arg21: memref<8x128xbf16, #tpu.memory_space<vmem>>, %arg22: memref<2x128xf32, #tpu.memory_space<vmem>>) attributes {dimension_semantics = [#tpu.dimension_semantics<arbitrary>, #tpu.dimension_semantics<arbitrary>], iteration_bounds = array<i64: 3, 1>, scalar_prefetch = 0 : i64, scratch_operands = 3 : i64, tpu.core_type = #tpu.core_type<tc>, window_params = [{transform_indices = @transform_0, window_bounds = array<i64: 8, 8>}, {pipeline_mode = #tpu.pipeline_mode<synchronous>, transform_indices = @transform_1, window_bounds = array<i64: 8, 128>}, {pipeline_mode = #tpu.pipeline_mode<synchronous>, transform_indices = @transform_2, window_bounds = array<i64: 128, 128>}, {pipeline_mode = #tpu.pipeline_mode<synchronous>, transform_indices = @transform_3, window_bounds = array<i64: 2, 128, 128>}, {pipeline_mode = #tpu.pipeline_mode<synchronous>, transform_indices = @transform_4, window_bounds = array<i64: 3, 1, 128>}, {transform_indices = @transform_5, window_bounds = array<i64: 8, 2>}, {pipeline_mode = #tpu.pipeline_mode<synchronous>, transform_indices = @transform_6, window_bounds = array<i64: 2, 128>}, {pipeline_mode = #tpu.pipeline_mode<synchronous>, transform_indices = @transform_7, window_bounds = array<i64: 128, 128>}, {pipeline_mode = #tpu.pipeline_mode<synchronous>, transform_indices = @transform_8, window_bounds = array<i64: 128, 128>}, {pipeline_mode = #tpu.pipeline_mode<synchronous>, transform_indices = @transform_9, window_bounds = array<i64: 1, 128>}, {pipeline_mode = #tpu.pipeline_mode<synchronous>, transform_indices = @transform_10, window_bounds = array<i64: 128, 128>}, {pipeline_mode = #tpu.pipeline_mode<synchronous>, transform_indices = @transform_11, window_bounds = array<i64: 128, 128>}, {pipeline_mode = #tpu.pipeline_mode<synchronous>, transform_indices = @transform_12, window_bounds = array<i64: 1, 128>}, {pipeline_mode = #tpu.pipeline_mode<synchronous>, transform_indices = @transform_13, window_bounds = array<i64: 1, 128>}, {pipeline_mode = #tpu.pipeline_mode<synchronous>, transform_indices = @transform_14, window_bounds = array<i64: 128, 128>}, {pipeline_mode = #tpu.pipeline_mode<synchronous>, transform_indices = @transform_15, window_bounds = array<i64: 128, 128>}, {pipeline_mode = #tpu.pipeline_mode<synchronous>, transform_indices = @transform_16, window_bounds = array<i64: 1, 128>}, {pipeline_mode = #tpu.pipeline_mode<synchronous>, transform_indices = @transform_17, window_bounds = array<i64: 2, 128>}]} {
    %c0_i32 = arith.constant 0 : i32
    %0 = arith.cmpi eq, %arg1, %c0_i32 : i32
    %c0_i32_0 = arith.constant 0 : i32
    %1 = arith.cmpi eq, %arg0, %c0_i32_0 : i32
    %2 = arith.andi %0, %1 : i1
    %3 = arith.extui %2 : i1 to i32
    %c0_i32_1 = arith.constant 0 : i32
    %4 = arith.cmpi ne, %3, %c0_i32_1 : i32
    scf.if %4 {
      %c0_19 = arith.constant 0 : index
      %c0_20 = arith.constant 0 : index
      %38 = vector.load %arg3[%c0_19, %c0_20] : memref<8x128xbf16, #tpu.memory_space<vmem>>, vector<8x128xbf16>
      %c0_21 = arith.constant 0 : index
      %c0_22 = arith.constant 0 : index
      %39 = vector.load %arg4[%c0_21, %c0_22] : memref<128x128xbf16, #tpu.memory_space<vmem>>, vector<128x128xbf16>
      %cst_23 = arith.constant dense<0.000000e+00> : vector<8x128xf32>
      %40 = tpu.matmul %38, %39, %cst_23 {dimension_numbers = #tpu.dot_dimension_numbers<[1], [0], [0], [1], [0, 0, 1, 1], [], []>} : vector<8x128xbf16>, vector<128x128xbf16>, vector<8x128xf32> -> vector<8x128xf32>
      %41 = arith.truncf %40 : vector<8x128xf32> to vector<8x128xbf16>
      %c0_24 = arith.constant 0 : index
      %c0_25 = arith.constant 0 : index
      %42 = vector.load %arg21[%c0_24, %c0_25] : memref<8x128xbf16, #tpu.memory_space<vmem>>, vector<8x128xbf16>
      tpu.vector_store %arg21[%c0_24, %c0_25], %41 {strides = array<i32>} : memref<8x128xbf16, #tpu.memory_space<vmem>>, vector<8x128xbf16>,
    } else {
    }
    %c0_i32_2 = arith.constant 0 : i32
    %5 = arith.cmpi eq, %arg1, %c0_i32_2 : i32
    %c0_i32_3 = arith.constant 0 : i32
    %6 = arith.cmpi sgt, %arg0, %c0_i32_3 : i32
    %7 = arith.andi %5, %6 : i1
    %8 = arith.extui %7 : i1 to i32
    %c0_i32_4 = arith.constant 0 : i32
    %9 = arith.cmpi ne, %8, %c0_i32_4 : i32
    scf.if %9 {
      %c1_i32 = arith.constant 1 : i32
      %38 = arith.subi %arg0, %c1_i32 : i32
      %c0_i32_19 = arith.constant 0 : i32
      %39 = arith.maxsi %38, %c0_i32_19 : i32
      %c0_20 = arith.constant 0 : index
      %c0_21 = arith.constant 0 : index
      %40 = vector.load %arg20[%c0_20, %c0_21] : memref<8x128xbf16, #tpu.memory_space<vmem>>, vector<8x128xbf16>
      %41 = arith.index_cast %39 : i32 to index
      %c0_22 = arith.constant 0 : index
      %c0_23 = arith.constant 0 : index
      %42 = vector.load %arg5[%41, %c0_22, %c0_23] : memref<2x128x128xbf16, #tpu.memory_space<vmem>>, vector<1x128x128xbf16>
      %43 = vector.shape_cast %42 : vector<1x128x128xbf16> to vector<128x128xbf16>
      %cst_24 = arith.constant dense<0.000000e+00> : vector<8x128xf32>
      %44 = tpu.matmul %40, %43, %cst_24 {dimension_numbers = #tpu.dot_dimension_numbers<[1], [0], [0], [1], [0, 0, 1, 1], [], []>} : vector<8x128xbf16>, vector<128x128xbf16>, vector<8x128xf32> -> vector<8x128xf32>
      %45 = arith.truncf %44 : vector<8x128xf32> to vector<8x128xbf16>
      %c0_25 = arith.constant 0 : index
      %c0_26 = arith.constant 0 : index
      %46 = vector.load %arg21[%c0_25, %c0_26] : memref<8x128xbf16, #tpu.memory_space<vmem>>, vector<8x128xbf16>
      tpu.vector_store %arg21[%c0_25, %c0_26], %45 {strides = array<i32>} : memref<8x128xbf16, #tpu.memory_space<vmem>>, vector<8x128xbf16>,
    } else {
    }
    %c0_i32_5 = arith.constant 0 : i32
    %10 = arith.cmpi eq, %arg1, %c0_i32_5 : i32
    %c2_i32 = arith.constant 2 : i32
    %11 = arith.cmpi eq, %arg0, %c2_i32 : i32
    %12 = arith.andi %10, %11 : i1
    %13 = arith.extui %12 : i1 to i32
    %c0_i32_6 = arith.constant 0 : i32
    %14 = arith.cmpi ne, %13, %c0_i32_6 : i32
    scf.if %14 {
      %cst_19 = arith.constant 0xFF800000 : f32
      %38 = vector.broadcast %cst_19 : f32 to vector<2x128xf32>
      %c0_20 = arith.constant 0 : index
      %c0_21 = arith.constant 0 : index
      %39 = vector.load %arg22[%c0_20, %c0_21] : memref<2x128xf32, #tpu.memory_space<vmem>>, vector<2x128xf32>
      tpu.vector_store %arg22[%c0_20, %c0_21], %38 {strides = array<i32>} : memref<2x128xf32, #tpu.memory_space<vmem>>, vector<2x128xf32>,
    } else {
    }
    %c0 = arith.constant 0 : index
    %c0_7 = arith.constant 0 : index
    %15 = vector.load %arg2[%c0, %c0_7] : memref<8x8xbf16, #tpu.memory_space<vmem>>, vector<8x8xbf16>
    %c0_8 = arith.constant 0 : index
    %c0_9 = arith.constant 0 : index
    %16 = vector.load %arg21[%c0_8, %c0_9] : memref<8x128xbf16, #tpu.memory_space<vmem>>, vector<8x128xbf16>
    %cst = arith.constant dense<0.000000e+00> : vector<8x128xf32>
    %17 = tpu.matmul %15, %16, %cst {dimension_numbers = #tpu.dot_dimension_numbers<[1], [0], [0], [1], [0, 0, 1, 1], [], []>} : vector<8x8xbf16>, vector<8x128xbf16>, vector<8x128xf32> -> vector<8x128xf32>
    %18 = arith.index_cast %arg0 : i32 to index
    %c0_10 = arith.constant 0 : index
    %c0_11 = arith.constant 0 : index
    %19 = vector.load %arg6[%18, %c0_10, %c0_11] : memref<3x1x128xf32, #tpu.memory_space<vmem>>, vector<1x1x128xf32>
    %20 = vector.shape_cast %19 : vector<1x1x128xf32> to vector<1x128xf32>
    %21 = vector.broadcast %20 : vector<1x128xf32> to vector<8x128xf32>
    %22 = arith.addf %17, %21 : vector<8x128xf32>
    %cst_12 = arith.constant 0.000000e+00 : f32
    %23 = vector.broadcast %cst_12 : f32 to vector<8x128xf32>
    %24 = arith.maximumf %22, %23 : vector<8x128xf32>
    %c8_i32 = arith.constant 8 : i32
    %25 = arith.muli %arg1, %c8_i32 : i32
    %26 = tpu.assume_multiple %25, 8 : i32
    %27 = arith.truncf %24 : vector<8x128xf32> to vector<8x128xbf16>
    %28 = arith.index_cast %26 : i32 to index
    %c0_13 = arith.constant 0 : index
    %29 = vector.load %arg20[%28, %c0_13] : memref<8x128xbf16, #tpu.memory_space<vmem>>, vector<8x128xbf16>
    tpu.vector_store %arg20[%28, %c0_13], %27 {strides = array<i32>} : memref<8x128xbf16, #tpu.memory_space<vmem>>, vector<8x128xbf16>,
    %c2_i32_14 = arith.constant 2 : i32
    %30 = arith.cmpi eq, %arg0, %c2_i32_14 : i32
    %31 = arith.extui %30 : i1 to i32
    %c0_i32_15 = arith.constant 0 : i32
    %32 = arith.cmpi ne, %31, %c0_i32_15 : i32
    scf.if %32 {
      %c0_19 = arith.constant 0 : index
      %c0_20 = arith.constant 0 : index
      %38 = vector.load %arg7[%c0_19, %c0_20] : memref<8x2xf32, #tpu.memory_space<vmem>>, vector<8x1xf32>
      %39 = vector.broadcast %38 : vector<8x1xf32> to vector<8x128xf32>
      %40 = arith.addf %24, %39 : vector<8x128xf32>
      %cst_21 = arith.constant dense<0xFF800000> : vector<128xf32>
      %41 = vector.multi_reduction <maximumf>, %40, %cst_21 [0] : vector<8x128xf32> to vector<128xf32>
      %42 = vector.shape_cast %41 : vector<128xf32> to vector<1x128xf32>
      %c0_22 = arith.constant 0 : index
      %c0_23 = arith.constant 0 : index
      %43 = vector.load %arg22[%c0_22, %c0_23] : memref<2x128xf32, #tpu.memory_space<vmem>>, vector<1x128xf32>
      %44 = arith.maximumf %43, %42 : vector<1x128xf32>
      %c0_24 = arith.constant 0 : index
      %c0_25 = arith.constant 0 : index
      %45 = vector.load %arg22[%c0_24, %c0_25] : memref<2x128xf32, #tpu.memory_space<vmem>>, vector<1x128xf32>
      tpu.vector_store %arg22[%c0_24, %c0_25], %44 {strides = array<i32>} : memref<2x128xf32, #tpu.memory_space<vmem>>, vector<1x128xf32>,
      %c0_26 = arith.constant 0 : index
      %c1 = arith.constant 1 : index
      %46 = vector.load %arg7[%c0_26, %c1] : memref<8x2xf32, #tpu.memory_space<vmem>>, vector<8x1xf32>
      %47 = vector.broadcast %46 : vector<8x1xf32> to vector<8x128xf32>
      %48 = arith.addf %24, %47 : vector<8x128xf32>
      %cst_27 = arith.constant dense<0xFF800000> : vector<128xf32>
      %49 = vector.multi_reduction <maximumf>, %48, %cst_27 [0] : vector<8x128xf32> to vector<128xf32>
      %50 = vector.shape_cast %49 : vector<128xf32> to vector<1x128xf32>
      %c1_28 = arith.constant 1 : index
      %c0_29 = arith.constant 0 : index
      %51 = vector.load %arg22[%c1_28, %c0_29] : memref<2x128xf32, #tpu.memory_space<vmem>>, vector<1x128xf32>
      %52 = arith.maximumf %51, %50 : vector<1x128xf32>
      %c1_30 = arith.constant 1 : index
      %c0_31 = arith.constant 0 : index
      %53 = vector.load %arg22[%c1_30, %c0_31] : memref<2x128xf32, #tpu.memory_space<vmem>>, vector<1x128xf32>
      tpu.vector_store %arg22[%c1_30, %c0_31], %52 {strides = array<i32>} : memref<2x128xf32, #tpu.memory_space<vmem>>, vector<1x128xf32>,
    } else {
    }
    %c2_i32_16 = arith.constant 2 : i32
    %33 = arith.cmpi eq, %arg0, %c2_i32_16 : i32
    %c0_i32_17 = arith.constant 0 : i32
    %34 = arith.cmpi eq, %arg1, %c0_i32_17 : i32
    %35 = arith.andi %33, %34 : i1
    %36 = arith.extui %35 : i1 to i32
    %c0_i32_18 = arith.constant 0 : i32
    %37 = arith.cmpi ne, %36, %c0_i32_18 : i32
    scf.if %37 {
      %c0_19 = arith.constant 0 : index
      %c0_20 = arith.constant 0 : index
      %38 = vector.load %arg22[%c0_19, %c0_20] : memref<2x128xf32, #tpu.memory_space<vmem>>, vector<2x128xf32>
      %c0_21 = arith.constant 0 : index
      %c0_22 = arith.constant 0 : index
      %39 = vector.load %arg8[%c0_21, %c0_22] : memref<2x128xf32, #tpu.memory_space<vmem>>, vector<2x128xf32>
      %c0_23 = arith.constant 0 : index
      %c0_24 = arith.constant 0 : index
      %40 = vector.load %arg9[%c0_23, %c0_24] : memref<128x128xf32, #tpu.memory_space<vmem>>, vector<128x128xf32>
      %cst_25 = arith.constant dense<0.000000e+00> : vector<2x128xf32>
      %41 = tpu.matmul %38, %40, %cst_25 {dimension_numbers = #tpu.dot_dimension_numbers<[1], [0], [0], [1], [0, 0, 1, 1], [], []>} : vector<2x128xf32>, vector<128x128xf32>, vector<2x128xf32> -> vector<2x128xf32>
      %c0_26 = arith.constant 0 : index
      %c0_27 = arith.constant 0 : index
      %42 = vector.load %arg10[%c0_26, %c0_27] : memref<128x128xf32, #tpu.memory_space<vmem>>, vector<128x128xf32>
      %cst_28 = arith.constant dense<0.000000e+00> : vector<2x128xf32>
      %43 = tpu.matmul %39, %42, %cst_28 {dimension_numbers = #tpu.dot_dimension_numbers<[1], [0], [0], [1], [0, 0, 1, 1], [], []>} : vector<2x128xf32>, vector<128x128xf32>, vector<2x128xf32> -> vector<2x128xf32>
      %44 = arith.addf %41, %43 : vector<2x128xf32>
      %c0_29 = arith.constant 0 : index
      %c0_30 = arith.constant 0 : index
      %45 = vector.load %arg11[%c0_29, %c0_30] : memref<1x128xf32, #tpu.memory_space<vmem>>, vector<1x128xf32>
      %46 = vector.broadcast %45 : vector<1x128xf32> to vector<2x128xf32>
      %47 = arith.addf %44, %46 : vector<2x128xf32>
      %48 = arith.negf %47 : vector<2x128xf32>
      %49 = math.exp %48 : vector<2x128xf32>
      %cst_31 = arith.constant 1.000000e+00 : f32
      %50 = vector.broadcast %cst_31 : f32 to vector<2x128xf32>
      %51 = arith.addf %50, %49 : vector<2x128xf32>
      %52 = arith.divf %50, %51 : vector<2x128xf32>
      %53 = arith.mulf %47, %52 : vector<2x128xf32>
      %c0_32 = arith.constant 0 : index
      %c0_33 = arith.constant 0 : index
      %54 = vector.load %arg12[%c0_32, %c0_33] : memref<128x128xf32, #tpu.memory_space<vmem>>, vector<128x128xf32>
      %cst_34 = arith.constant dense<0.000000e+00> : vector<2x128xf32>
      %55 = tpu.matmul %53, %54, %cst_34 {dimension_numbers = #tpu.dot_dimension_numbers<[1], [0], [0], [1], [0, 0, 1, 1], [], []>} : vector<2x128xf32>, vector<128x128xf32>, vector<2x128xf32> -> vector<2x128xf32>
      %c0_35 = arith.constant 0 : index
      %c0_36 = arith.constant 0 : index
      %56 = vector.load %arg14[%c0_35, %c0_36] : memref<1x128xf32, #tpu.memory_space<vmem>>, vector<1x128xf32>
      %57 = vector.broadcast %56 : vector<1x128xf32> to vector<2x128xf32>
      %58 = arith.addf %55, %57 : vector<2x128xf32>
      %c0_37 = arith.constant 0 : index
      %c0_38 = arith.constant 0 : index
      %59 = vector.load %arg13[%c0_37, %c0_38] : memref<128x128xf32, #tpu.memory_space<vmem>>, vector<128x128xf32>
      %cst_39 = arith.constant dense<0.000000e+00> : vector<2x128xf32>
      %60 = tpu.matmul %53, %59, %cst_39 {dimension_numbers = #tpu.dot_dimension_numbers<[1], [0], [0], [1], [0, 0, 1, 1], [], []>} : vector<2x128xf32>, vector<128x128xf32>, vector<2x128xf32> -> vector<2x128xf32>
      %c0_40 = arith.constant 0 : index
      %c0_41 = arith.constant 0 : index
      %61 = vector.load %arg15[%c0_40, %c0_41] : memref<1x128xf32, #tpu.memory_space<vmem>>, vector<1x128xf32>
      %62 = vector.broadcast %61 : vector<1x128xf32> to vector<2x128xf32>
      %63 = arith.addf %60, %62 : vector<2x128xf32>
      %64 = arith.addf %38, %58 : vector<2x128xf32>
      %65 = arith.addf %39, %63 : vector<2x128xf32>
      %c0_42 = arith.constant 0 : index
      %c0_43 = arith.constant 0 : index
      %66 = vector.load %arg16[%c0_42, %c0_43] : memref<128x128xf32, #tpu.memory_space<vmem>>, vector<128x128xf32>
      %cst_44 = arith.constant dense<0.000000e+00> : vector<2x128xf32>
      %67 = tpu.matmul %64, %66, %cst_44 {dimension_numbers = #tpu.dot_dimension_numbers<[1], [0], [0], [1], [0, 0, 1, 1], [], []>} : vector<2x128xf32>, vector<128x128xf32>, vector<2x128xf32> -> vector<2x128xf32>
      %c0_45 = arith.constant 0 : index
      %c0_46 = arith.constant 0 : index
      %68 = vector.load %arg17[%c0_45, %c0_46] : memref<128x128xf32, #tpu.memory_space<vmem>>, vector<128x128xf32>
      %cst_47 = arith.constant dense<0.000000e+00> : vector<2x128xf32>
      %69 = tpu.matmul %65, %68, %cst_47 {dimension_numbers = #tpu.dot_dimension_numbers<[1], [0], [0], [1], [0, 0, 1, 1], [], []>} : vector<2x128xf32>, vector<128x128xf32>, vector<2x128xf32> -> vector<2x128xf32>
      %70 = arith.addf %67, %69 : vector<2x128xf32>
      %c0_48 = arith.constant 0 : index
      %c0_49 = arith.constant 0 : index
      %71 = vector.load %arg18[%c0_48, %c0_49] : memref<1x128xf32, #tpu.memory_space<vmem>>, vector<1x128xf32>
      %72 = vector.broadcast %71 : vector<1x128xf32> to vector<2x128xf32>
      %73 = arith.addf %70, %72 : vector<2x128xf32>
      %c0_50 = arith.constant 0 : index
      %c0_51 = arith.constant 0 : index
      %74 = vector.load %arg19[%c0_50, %c0_51] : memref<2x128xf32, #tpu.memory_space<vmem>>, vector<2x128xf32>
      tpu.vector_store %arg19[%c0_50, %c0_51], %73 {strides = array<i32>} : memref<2x128xf32, #tpu.memory_space<vmem>>, vector<2x128xf32>,
    } else {
    }
    return
  }
  func.func @transform_0(%arg0: i32, %arg1: i32) -> (i32, i32) {
    %c0_i32 = arith.constant 0 : i32
    %c0_i32_0 = arith.constant 0 : i32
    return %arg1, %c0_i32 : i32, i32
  }
  func.func @transform_1(%arg0: i32, %arg1: i32) -> (i32, i32) {
    %c0_i32 = arith.constant 0 : i32
    %c0_i32_0 = arith.constant 0 : i32
    %c0_i32_1 = arith.constant 0 : i32
    return %c0_i32, %c0_i32_0 : i32, i32
  }
  func.func @transform_2(%arg0: i32, %arg1: i32) -> (i32, i32) {
    %c0_i32 = arith.constant 0 : i32
    %c0_i32_0 = arith.constant 0 : i32
    %c0_i32_1 = arith.constant 0 : i32
    return %c0_i32, %c0_i32_0 : i32, i32
  }
  func.func @transform_3(%arg0: i32, %arg1: i32) -> (i32, i32, i32) {
    %c0_i32 = arith.constant 0 : i32
    %c0_i32_0 = arith.constant 0 : i32
    %c0_i32_1 = arith.constant 0 : i32
    %c0_i32_2 = arith.constant 0 : i32
    return %c0_i32, %c0_i32_0, %c0_i32_1 : i32, i32, i32
  }
  func.func @transform_4(%arg0: i32, %arg1: i32) -> (i32, i32, i32) {
    %c0_i32 = arith.constant 0 : i32
    %c0_i32_0 = arith.constant 0 : i32
    %c0_i32_1 = arith.constant 0 : i32
    %c0_i32_2 = arith.constant 0 : i32
    return %c0_i32, %c0_i32_0, %c0_i32_1 : i32, i32, i32
  }
  func.func @transform_5(%arg0: i32, %arg1: i32) -> (i32, i32) {
    %c0_i32 = arith.constant 0 : i32
    %c0_i32_0 = arith.constant 0 : i32
    return %arg1, %c0_i32 : i32, i32
  }
  func.func @transform_6(%arg0: i32, %arg1: i32) -> (i32, i32) {
    %c0_i32 = arith.constant 0 : i32
    %c0_i32_0 = arith.constant 0 : i32
    %c0_i32_1 = arith.constant 0 : i32
    return %c0_i32, %c0_i32_0 : i32, i32
  }
  func.func @transform_7(%arg0: i32, %arg1: i32) -> (i32, i32) {
    %c0_i32 = arith.constant 0 : i32
    %c0_i32_0 = arith.constant 0 : i32
    %c0_i32_1 = arith.constant 0 : i32
    return %c0_i32, %c0_i32_0 : i32, i32
  }
  func.func @transform_8(%arg0: i32, %arg1: i32) -> (i32, i32) {
    %c0_i32 = arith.constant 0 : i32
    %c0_i32_0 = arith.constant 0 : i32
    %c0_i32_1 = arith.constant 0 : i32
    return %c0_i32, %c0_i32_0 : i32, i32
  }
  func.func @transform_9(%arg0: i32, %arg1: i32) -> (i32, i32) {
    %c0_i32 = arith.constant 0 : i32
    %c0_i32_0 = arith.constant 0 : i32
    %c0_i32_1 = arith.constant 0 : i32
    return %c0_i32, %c0_i32_0 : i32, i32
  }
  func.func @transform_10(%arg0: i32, %arg1: i32) -> (i32, i32) {
    %c0_i32 = arith.constant 0 : i32
    %c0_i32_0 = arith.constant 0 : i32
    %c0_i32_1 = arith.constant 0 : i32
    return %c0_i32, %c0_i32_0 : i32, i32
  }
  func.func @transform_11(%arg0: i32, %arg1: i32) -> (i32, i32) {
    %c0_i32 = arith.constant 0 : i32
    %c0_i32_0 = arith.constant 0 : i32
    %c0_i32_1 = arith.constant 0 : i32
    return %c0_i32, %c0_i32_0 : i32, i32
  }
  func.func @transform_12(%arg0: i32, %arg1: i32) -> (i32, i32) {
    %c0_i32 = arith.constant 0 : i32
    %c0_i32_0 = arith.constant 0 : i32
    %c0_i32_1 = arith.constant 0 : i32
    return %c0_i32, %c0_i32_0 : i32, i32
  }
  func.func @transform_13(%arg0: i32, %arg1: i32) -> (i32, i32) {
    %c0_i32 = arith.constant 0 : i32
    %c0_i32_0 = arith.constant 0 : i32
    %c0_i32_1 = arith.constant 0 : i32
    return %c0_i32, %c0_i32_0 : i32, i32
  }
  func.func @transform_14(%arg0: i32, %arg1: i32) -> (i32, i32) {
    %c0_i32 = arith.constant 0 : i32
    %c0_i32_0 = arith.constant 0 : i32
    %c0_i32_1 = arith.constant 0 : i32
    return %c0_i32, %c0_i32_0 : i32, i32
  }
  func.func @transform_15(%arg0: i32, %arg1: i32) -> (i32, i32) {
    %c0_i32 = arith.constant 0 : i32
    %c0_i32_0 = arith.constant 0 : i32
    %c0_i32_1 = arith.constant 0 : i32
    return %c0_i32, %c0_i32_0 : i32, i32
  }
  func.func @transform_16(%arg0: i32, %arg1: i32) -> (i32, i32) {
    %c0_i32 = arith.constant 0 : i32
    %c0_i32_0 = arith.constant 0 : i32
    %c0_i32_1 = arith.constant 0 : i32
    return %c0_i32, %c0_i32_0 : i32, i32
  }
  func.func @transform_17(%arg0: i32, %arg1: i32) -> (i32, i32) {
    %c0_i32 = arith.constant 0 : i32
    %c0_i32_0 = arith.constant 0 : i32
    %c0_i32_1 = arith.constant 0 : i32
    return %c0_i32, %c0_i32_0 : i32, i32
  }
}

</mosaic_0001>

<llo_original>
// kernel: tpu_custom_call.1
$region0: #{tpu_custom_call.1}
  #allocation0 [shape = 'u32[]', space=smem, size = 0x4, offset = 0x4, fixed_abs, tag = 'smem constant byte address 0x4 - core index']
  #allocation1 [shape = 'u32[144,128]{1,0:T(1,128)}', space=vmem, size = 0x12000, scoped, tag = 'internal scratch']
  #allocation2 [shape = 'bf16[8,128]{1,0:T(8,128)(2,1)}', space=vmem, size = 0x800, scoped, tag = 'scratch operand']
  #allocation3 [shape = 'bf16[8,128]{1,0:T(8,128)(2,1)}', space=vmem, size = 0x800, scoped, tag = 'scratch operand']
  #allocation4 [shape = 'f32[2,128]{1,0:T(2,128)}', space=vmem, size = 0x400, scoped, tag = 'scratch operand']
  %s0 = inlined_call_operand.hbm [shape: bf16[8,8], index: 0, kind: input, shape index: {}]
  %s1 = inlined_call_operand.hbm [shape: bf16[8,128], index: 1, kind: input, shape index: {}]
  %s2 = inlined_call_operand.hbm [shape: bf16[128,128], index: 2, kind: input, shape index: {}]
  %s3 = inlined_call_operand.hbm [shape: bf16[2,128,128], index: 3, kind: input, shape index: {}]
  %s4 = inlined_call_operand.hbm [shape: f32[3,1,128], index: 4, kind: input, shape index: {}]
  %s5 = inlined_call_operand.hbm [shape: f32[8,2], index: 5, kind: input, shape index: {}]
  %s6 = inlined_call_operand.hbm [shape: f32[2,128], index: 6, kind: input, shape index: {}]
  %s7 = inlined_call_operand.hbm [shape: f32[128,128], index: 7, kind: input, shape index: {}]
  %s8 = inlined_call_operand.hbm [shape: f32[128,128], index: 8, kind: input, shape index: {}]
  %s9 = inlined_call_operand.hbm [shape: f32[1,128], index: 9, kind: input, shape index: {}]
  %s10 = inlined_call_operand.hbm [shape: f32[128,128], index: 10, kind: input, shape index: {}]
  %s11 = inlined_call_operand.hbm [shape: f32[128,128], index: 11, kind: input, shape index: {}]
  %s12 = inlined_call_operand.hbm [shape: f32[1,128], index: 12, kind: input, shape index: {}]
  %s13 = inlined_call_operand.hbm [shape: f32[1,128], index: 13, kind: input, shape index: {}]
  %s14 = inlined_call_operand.hbm [shape: f32[128,128], index: 14, kind: input, shape index: {}]
  %s15 = inlined_call_operand.hbm [shape: f32[128,128], index: 15, kind: input, shape index: {}]
  %s16 = inlined_call_operand.hbm [shape: f32[1,128], index: 16, kind: input, shape index: {}]
  %s17 = inlined_call_operand.hbm [shape: f32[2,128], index: 17, kind: output, shape index: {}]
  %s18 = sld [smem:[#allocation0]]
  $region189: #{tpu_custom_call.1} parent=0
    _
  %s20 = ssub.s32 1, %s18
  %s21 = scalar_select 0, %s20, %s18
  $region1: #{tpu_custom_call.1} parent=0
    #allocation5 [shape = 'u8[2048]{0}', space=vmem, size = 0x800, scoped, tag = 'input window, operand 0, single buffered']
    #allocation6 [shape = 's32[2]{0}', space=sflag, size = 0x8, scoped, tag = 'scoped memory for tpu_custom_call.1']
    #allocation7 [shape = 's32[2]{0}', space=sflag, size = 0x8, scoped, tag = 'scoped memory for tpu_custom_call.1']
    #allocation8 [shape = 'u8[2048]{0}', space=vmem, size = 0x800, scoped, tag = 'input window, operand 1, single buffered']
    #allocation9 [shape = 's32[1]{0}', space=sflag, size = 0x4, scoped, tag = 'scoped memory for tpu_custom_call.1']
    #allocation10 [shape = 'u8[32768]{0}', space=vmem, size = 0x8000, scoped, tag = 'input window, operand 2, single buffered']
    #allocation11 [shape = 'u8[65536]{0}', space=vmem, size = 0x10000, scoped, tag = 'input window, operand 3, single buffered']
    #allocation12 [shape = 's32[1]{0}', space=sflag, size = 0x4, scoped, tag = 'scoped memory for tpu_custom_call.1']
    #allocation13 [shape = 'u8[1536]{0}', space=vmem, size = 0x800, scoped, tag = 'input window, operand 4, single buffered']
    #allocation14 [shape = 'u8[4096]{0}', space=vmem, size = 0x1000, scoped, tag = 'input window, operand 5, single buffered']
    #allocation15 [shape = 's32[1]{0}', space=sflag, size = 0x4, scoped, tag = 'scoped memory for tpu_custom_call.1']
    #allocation16 [shape = 'u8[1024]{0}', space=vmem, size = 0x400, scoped, tag = 'input window, operand 6, single buffered']
    #allocation17 [shape = 'u8[65536]{0}', space=vmem, size = 0x10000, scoped, tag = 'input window, operand 7, single buffered']
    #allocation18 [shape = 's32[1]{0}', space=sflag, size = 0x4, scoped, tag = 'scoped memory for tpu_custom_call.1']
    #allocation19 [shape = 'u8[65536]{0}', space=vmem, size = 0x10000, scoped, tag = 'input window, operand 8, single buffered']
    #allocation20 [shape = 'u8[512]{0}', space=vmem, size = 0x400, scoped, tag = 'input window, operand 9, single buffered']
    #allocation21 [shape = 's32[1]{0}', space=sflag, size = 0x4, scoped, tag = 'scoped memory for tpu_custom_call.1']
    #allocation22 [shape = 'u8[65536]{0}', space=vmem, size = 0x10000, scoped, tag = 'input window, operand 10, single buffered']
    #allocation23 [shape = 'u8[65536]{0}', space=vmem, size = 0x10000, scoped, tag = 'input window, operand 11, single buffered']
    #allocation24 [shape = 's32[1]{0}', space=sflag, size = 0x4, scoped, tag = 'scoped memory for tpu_custom_call.1']
    #allocation25 [shape = 'u8[512]{0}', space=vmem, size = 0x400, scoped, tag = 'input window, operand 12, single buffered']
    #allocation26 [shape = 'u8[512]{0}', space=vmem, size = 0x400, scoped, tag = 'input window, operand 13, single buffered']
    #allocation27 [shape = 's32[1]{0}', space=sflag, size = 0x4, scoped, tag = 'scoped memory for tpu_custom_call.1']
    #allocation28 [shape = 'u8[65536]{0}', space=vmem, size = 0x10000, scoped, tag = 'input window, operand 14, single buffered']
    #allocation29 [shape = 'u8[65536]{0}', space=vmem, size = 0x10000, scoped, tag = 'input window, operand 15, single buffered']
    #allocation30 [shape = 's32[1]{0}', space=sflag, size = 0x4, scoped, tag = 'scoped memory for tpu_custom_call.1']
    #allocation31 [shape = 'u8[512]{0}', space=vmem, size = 0x400, scoped, tag = 'input window, operand 16, single buffered']
    #allocation32 [shape = 'u8[1024]{0}', space=vmem, size = 0x400, scoped, tag = 'output window, operand 0, single buffered']
    %22 = vsyncpa [#allocation6], 0
    %23 = vsyncpa [#allocation9], 0
    %24 = vsyncpa [#allocation12], 0
    %25 = vsyncpa [#allocation15], 0
    %26 = vsyncpa [#allocation18], 0
    %27 = vsyncpa [#allocation21], 0
    %28 = vsyncpa [#allocation24], 0
    %29 = vsyncpa [#allocation27], 0
    %30 = vsyncpa [#allocation30], 0
    %31 = vsyncpa [#allocation7], 0
    loop: start=0, step=1, limit=5
    $region2: #{tpu_custom_call.1} parent=1 // loop_pre_header
      _
    $region3: #{tpu_custom_call.1} parent=1 // loop_header
      %s33 = sphi 0, %s37
      %p34 = scmp.ge.s32.totalorder %s33, 5
      %s40 = sphi 0, %s52
      %s41 = sphi 0, %s48
      %s42 = sphi 0, %s40
      %s43 = sphi 0, %s41
      %s44 = sphi 0, %s42
      %s45 = sphi 0, %s43
      %s55 = sphi 0, %s57
      %s58 = sphi 0, %s55
      %s59 = sphi 0, %s58
      %s75 = sphi 0, %s59
      %s79 = sphi 0, %s79
      %s81 = sphi 0, %s79
      %s82 = sphi 0, %s81
      %s96 = sphi 0, %s82
      %s100 = sphi 0, %s100
      %s102 = sphi 0, %s100
      %s103 = sphi 0, %s102
      %s117 = sphi 0, %s103
      %s121 = sphi 0, %s121
      %s123 = sphi 0, %s121
      %s124 = sphi 0, %s123
      %s138 = sphi 0, %s124
      %s142 = sphi 0, %s142
      %s144 = sphi 0, %s142
      %s145 = sphi 0, %s144
      %s159 = sphi 0, %s145
      %s165 = sphi 0, %s167
      %s168 = sphi 0, %s165
      %s169 = sphi 0, %s168
      %s185 = sphi 0, %s169
      %s189 = sphi 0, %s189
      %s191 = sphi 0, %s189
      %s192 = sphi 0, %s191
      %s206 = sphi 0, %s192
      %s210 = sphi 0, %s210
      %s212 = sphi 0, %s210
      %s213 = sphi 0, %s212
      %s227 = sphi 0, %s213
      %s231 = sphi 0, %s231
      %s233 = sphi 0, %s231
      %s234 = sphi 0, %s233
      %s248 = sphi 0, %s234
      %s252 = sphi 0, %s252
      %s254 = sphi 0, %s252
      %s255 = sphi 0, %s254
      %s269 = sphi 0, %s255
      %s273 = sphi 0, %s273
      %s275 = sphi 0, %s273
      %s276 = sphi 0, %s275
      %s290 = sphi 0, %s276
      %s294 = sphi 0, %s294
      %s296 = sphi 0, %s294
      %s297 = sphi 0, %s296
      %s311 = sphi 0, %s297
      %s315 = sphi 0, %s315
      %s317 = sphi 0, %s315
      %s318 = sphi 0, %s317
      %s332 = sphi 0, %s318
      %s336 = sphi 0, %s336
      %s338 = sphi 0, %s336
      %s339 = sphi 0, %s338
      %s353 = sphi 0, %s339
      %s357 = sphi 0, %s357
      %s359 = sphi 0, %s357
      %s360 = sphi 0, %s359
      %s374 = sphi 0, %s360
      %s378 = sphi 0, %s378
      %s380 = sphi 0, %s378
      %s381 = sphi 0, %s380
      %s395 = sphi 0, %s381
      %s399 = sphi 0, %s399
      %s401 = sphi 0, %s399
      %s402 = sphi 0, %s401
      %s416 = sphi 0, %s402
      %s420 = sphi 0, %s420
      %s422 = sphi 0, %s420
      %s423 = sphi 0, %s422
      %s437 = sphi 0, %s423
    $region4: #{tpu_custom_call.1} parent=1 // loop_header_branch
      %36 = sbr.rel (%p34) target = $region8
    $region5: #{tpu_custom_call.1} parent=1 // loop_body
      %s38 = ssub.s32 %s33, 1
      %s39 = ssub.s32 %s33, 2
      %s46 = sadd.s32 1, %s41
      %p47 = scmp.ge.s32.totalorder %s46, 1
      %s48 = scalar_select %p47, 0, %s46
      %s49 = sadd.s32 1, %s40
      %s50 = scalar_select %p47, %s49, %s40
      %p51 = scmp.ge.s32.totalorder %s50, 3
      %s52 = scalar_select %p51, 0, %s50
      %s53 = ssub.s32 %s41, %s48
      %p54 = scmp.eq.s32.totalorder %s53, 0
      %s56 = sadd.s32 %s55, 1
      %s57 = scalar_select %p54, %s55, %s56
      %p60 = pneg %p54
      %p61 = scmp.eq.s32.totalorder %s33, 2
      %p62 = por %p60, %p61
      %p63 = scmp.ne.s32.totalorder %s55, %s58
      %p64 = scmp.eq.s32.totalorder %s33, 0
      %p65 = por %p63, %p64
      %p66 = scmp.ne.s32.totalorder %s55, %s58
      %p67 = scmp.eq.s32.totalorder %s38, 2
      %p68 = por %p66, %p67
      %p69 = scmp.ne.s32.totalorder %s58, %s59
      %p70 = scmp.eq.s32.totalorder %s38, 0
      %p71 = por %p69, %p70
      %p72 = scmp.ne.s32.totalorder %s58, %s59
      %p73 = scmp.eq.s32.totalorder %s39, 2
      %p74 = por %p72, %p73
      %p76 = scmp.ne.s32.totalorder %s59, %s75
      %p77 = scmp.eq.s32.totalorder %s39, 0
      %p78 = por %p76, %p77
      %s80 = sadd.s32 %s79, 1
      %p83 = scmp.eq.s32.totalorder %s33, 2
      %p84 = scmp.ne.s32.totalorder %s79, %s81
      %p85 = scmp.eq.s32.totalorder %s33, 0
      %p86 = por %p84, %p85
      %p87 = scmp.ne.s32.totalorder %s79, %s81
      %p88 = scmp.eq.s32.totalorder %s38, 2
      %p89 = por %p87, %p88
      %p90 = scmp.ne.s32.totalorder %s81, %s82
      %p91 = scmp.eq.s32.totalorder %s38, 0
      %p92 = por %p90, %p91
      %p93 = scmp.ne.s32.totalorder %s81, %s82
      %p94 = scmp.eq.s32.totalorder %s39, 2
      %p95 = por %p93, %p94
      %p97 = scmp.ne.s32.totalorder %s82, %s96
      %p98 = scmp.eq.s32.totalorder %s39, 0
      %p99 = por %p97, %p98
      %s101 = sadd.s32 %s100, 1
      %p104 = scmp.eq.s32.totalorder %s33, 2
      %p105 = scmp.ne.s32.totalorder %s100, %s102
      %p106 = scmp.eq.s32.totalorder %s33, 0
      %p107 = por %p105, %p106
      %p108 = scmp.ne.s32.totalorder %s100, %s102
      %p109 = scmp.eq.s32.totalorder %s38, 2
      %p110 = por %p108, %p109
      %p111 = scmp.ne.s32.totalorder %s102, %s103
      %p112 = scmp.eq.s32.totalorder %s38, 0
      %p113 = por %p111, %p112
      %p114 = scmp.ne.s32.totalorder %s102, %s103
      %p115 = scmp.eq.s32.totalorder %s39, 2
      %p116 = por %p114, %p115
      %p118 = scmp.ne.s32.totalorder %s103, %s117
      %p119 = scmp.eq.s32.totalorder %s39, 0
      %p120 = por %p118, %p119
      %s122 = sadd.s32 %s121, 1
      %p125 = scmp.eq.s32.totalorder %s33, 2
      %p126 = scmp.ne.s32.totalorder %s121, %s123
      %p127 = scmp.eq.s32.totalorder %s33, 0
      %p128 = por %p126, %p127
      %p129 = scmp.ne.s32.totalorder %s121, %s123
      %p130 = scmp.eq.s32.totalorder %s38, 2
      %p131 = por %p129, %p130
      %p132 = scmp.ne.s32.totalorder %s123, %s124
      %p133 = scmp.eq.s32.totalorder %s38, 0
      %p134 = por %p132, %p133
      %p135 = scmp.ne.s32.totalorder %s123, %s124
      %p136 = scmp.eq.s32.totalorder %s39, 2
      %p137 = por %p135, %p136
      %p139 = scmp.ne.s32.totalorder %s124, %s138
      %p140 = scmp.eq.s32.totalorder %s39, 0
      %p141 = por %p139, %p140
      %s143 = sadd.s32 %s142, 1
      %p146 = scmp.eq.s32.totalorder %s33, 2
      %p147 = scmp.ne.s32.totalorder %s142, %s144
      %p148 = scmp.eq.s32.totalorder %s33, 0
      %p149 = por %p147, %p148
      %p150 = scmp.ne.s32.totalorder %s142, %s144
      %p151 = scmp.eq.s32.totalorder %s38, 2
      %p152 = por %p150, %p151
      %p153 = scmp.ne.s32.totalorder %s144, %s145
      %p154 = scmp.eq.s32.totalorder %s38, 0
      %p155 = por %p153, %p154
      %p156 = scmp.ne.s32.totalorder %s144, %s145
      %p157 = scmp.eq.s32.totalorder %s39, 2
      %p158 = por %p156, %p157
      %p160 = scmp.ne.s32.totalorder %s145, %s159
      %p161 = scmp.eq.s32.totalorder %s39, 0
      %p162 = por %p160, %p161
      %s163 = ssub.s32 %s41, %s48
      %p164 = scmp.eq.s32.totalorder %s163, 0
      %s166 = sadd.s32 %s165, 1
      %s167 = scalar_select %p164, %s165, %s166
      %p170 = pneg %p164
      %p171 = scmp.eq.s32.totalorder %s33, 2
      %p172 = por %p170, %p171
      %p173 = scmp.ne.s32.totalorder %s165, %s168
      %p174 = scmp.eq.s32.totalorder %s33, 0
      %p175 = por %p173, %p174
      %p176 = scmp.ne.s32.totalorder %s165, %s168
      %p177 = scmp.eq.s32.totalorder %s38, 2
      %p178 = por %p176, %p177
      %p179 = scmp.ne.s32.totalorder %s168, %s169
      %p180 = scmp.eq.s32.totalorder %s38, 0
      %p181 = por %p179, %p180
      %p182 = scmp.ne.s32.totalorder %s168, %s169
      %p183 = scmp.eq.s32.totalorder %s39, 2
      %p184 = por %p182, %p183
      %p186 = scmp.ne.s32.totalorder %s169, %s185
      %p187 = scmp.eq.s32.totalorder %s39, 0
      %p188 = por %p186, %p187
      %s190 = sadd.s32 %s189, 1
      %p193 = scmp.eq.s32.totalorder %s33, 2
      %p194 = scmp.ne.s32.totalorder %s189, %s191
      %p195 = scmp.eq.s32.totalorder %s33, 0
      %p196 = por %p194, %p195
      %p197 = scmp.ne.s32.totalorder %s189, %s191
      %p198 = scmp.eq.s32.totalorder %s38, 2
      %p199 = por %p197, %p198
      %p200 = scmp.ne.s32.totalorder %s191, %s192
      %p201 = scmp.eq.s32.totalorder %s38, 0
      %p202 = por %p200, %p201
      %p203 = scmp.ne.s32.totalorder %s191, %s192
      %p204 = scmp.eq.s32.totalorder %s39, 2
      %p205 = por %p203, %p204
      %p207 = scmp.ne.s32.totalorder %s192, %s206
      %p208 = scmp.eq.s32.totalorder %s39, 0
      %p209 = por %p207, %p208
      %s211 = sadd.s32 %s210, 1
      %p214 = scmp.eq.s32.totalorder %s33, 2
      %p215 = scmp.ne.s32.totalorder %s210, %s212
      %p216 = scmp.eq.s32.totalorder %s33, 0
      %p217 = por %p215, %p216
      %p218 = scmp.ne.s32.totalorder %s210, %s212
      %p219 = scmp.eq.s32.totalorder %s38, 2
      %p220 = por %p218, %p219
      %p221 = scmp.ne.s32.totalorder %s212, %s213
      %p222 = scmp.eq.s32.totalorder %s38, 0
      %p223 = por %p221, %p222
      %p224 = scmp.ne.s32.totalorder %s212, %s213
      %p225 = scmp.eq.s32.totalorder %s39, 2
      %p226 = por %p224, %p225
      %p228 = scmp.ne.s32.totalorder %s213, %s227
      %p229 = scmp.eq.s32.totalorder %s39, 0
      %p230 = por %p228, %p229
      %s232 = sadd.s32 %s231, 1
      %p235 = scmp.eq.s32.totalorder %s33, 2
      %p236 = scmp.ne.s32.totalorder %s231, %s233
      %p237 = scmp.eq.s32.totalorder %s33, 0
      %p238 = por %p236, %p237
      %p239 = scmp.ne.s32.totalorder %s231, %s233
      %p240 = scmp.eq.s32.totalorder %s38, 2
      %p241 = por %p239, %p240
      %p242 = scmp.ne.s32.totalorder %s233, %s234
      %p243 = scmp.eq.s32.totalorder %s38, 0
      %p244 = por %p242, %p243
      %p245 = scmp.ne.s32.totalorder %s233, %s234
      %p246 = scmp.eq.s32.totalorder %s39, 2
      %p247 = por %p245, %p246
      %p249 = scmp.ne.s32.totalorder %s234, %s248
      %p250 = scmp.eq.s32.totalorder %s39, 0
      %p251 = por %p249, %p250
      %s253 = sadd.s32 %s252, 1
      %p256 = scmp.eq.s32.totalorder %s33, 2
      %p257 = scmp.ne.s32.totalorder %s252, %s254
      %p258 = scmp.eq.s32.totalorder %s33, 0
      %p259 = por %p257, %p258
      %p260 = scmp.ne.s32.totalorder %s252, %s254
      %p261 = scmp.eq.s32.totalorder %s38, 2
      %p262 = por %p260, %p261
      %p263 = scmp.ne.s32.totalorder %s254, %s255
      %p264 = scmp.eq.s32.totalorder %s38, 0
      %p265 = por %p263, %p264
      %p266 = scmp.ne.s32.totalorder %s254, %s255
      %p267 = scmp.eq.s32.totalorder %s39, 2
      %p268 = por %p266, %p267
      %p270 = scmp.ne.s32.totalorder %s255, %s269
      %p271 = scmp.eq.s32.totalorder %s39, 0
      %p272 = por %p270, %p271
      %s274 = sadd.s32 %s273, 1
      %p277 = scmp.eq.s32.totalorder %s33, 2
      %p278 = scmp.ne.s32.totalorder %s273, %s275
      %p279 = scmp.eq.s32.totalorder %s33, 0
      %p280 = por %p278, %p279
      %p281 = scmp.ne.s32.totalorder %s273, %s275
      %p282 = scmp.eq.s32.totalorder %s38, 2
      %p283 = por %p281, %p282
      %p284 = scmp.ne.s32.totalorder %s275, %s276
      %p285 = scmp.eq.s32.totalorder %s38, 0
      %p286 = por %p284, %p285
      %p287 = scmp.ne.s32.totalorder %s275, %s276
      %p288 = scmp.eq.s32.totalorder %s39, 2
      %p289 = por %p287, %p288
      %p291 = scmp.ne.s32.totalorder %s276, %s290
      %p292 = scmp.eq.s32.totalorder %s39, 0
      %p293 = por %p291, %p292
      %s295 = sadd.s32 %s294, 1
      %p298 = scmp.eq.s32.totalorder %s33, 2
      %p299 = scmp.ne.s32.totalorder %s294, %s296
      %p300 = scmp.eq.s32.totalorder %s33, 0
      %p301 = por %p299, %p300
      %p302 = scmp.ne.s32.totalorder %s294, %s296
      %p303 = scmp.eq.s32.totalorder %s38, 2
      %p304 = por %p302, %p303
      %p305 = scmp.ne.s32.totalorder %s296, %s297
      %p306 = scmp.eq.s32.totalorder %s38, 0
      %p307 = por %p305, %p306
      %p308 = scmp.ne.s32.totalorder %s296, %s297
      %p309 = scmp.eq.s32.totalorder %s39, 2
      %p310 = por %p308, %p309
      %p312 = scmp.ne.s32.totalorder %s297, %s311
      %p313 = scmp.eq.s32.totalorder %s39, 0
      %p314 = por %p312, %p313
      %s316 = sadd.s32 %s315, 1
      %p319 = scmp.eq.s32.totalorder %s33, 2
      %p320 = scmp.ne.s32.totalorder %s315, %s317
      %p321 = scmp.eq.s32.totalorder %s33, 0
      %p322 = por %p320, %p321
      %p323 = scmp.ne.s32.totalorder %s315, %s317
      %p324 = scmp.eq.s32.totalorder %s38, 2
      %p325 = por %p323, %p324
      %p326 = scmp.ne.s32.totalorder %s317, %s318
      %p327 = scmp.eq.s32.totalorder %s38, 0
      %p328 = por %p326, %p327
      %p329 = scmp.ne.s32.totalorder %s317, %s318
      %p330 = scmp.eq.s32.totalorder %s39, 2
      %p331 = por %p329, %p330
      %p333 = scmp.ne.s32.totalorder %s318, %s332
      %p334 = scmp.eq.s32.totalorder %s39, 0
      %p335 = por %p333, %p334
      %s337 = sadd.s32 %s336, 1
      %p340 = scmp.eq.s32.totalorder %s33, 2
      %p341 = scmp.ne.s32.totalorder %s336, %s338
      %p342 = scmp.eq.s32.totalorder %s33, 0
      %p343 = por %p341, %p342
      %p344 = scmp.ne.s32.totalorder %s336, %s338
      %p345 = scmp.eq.s32.totalorder %s38, 2
      %p346 = por %p344, %p345
      %p347 = scmp.ne.s32.totalorder %s338, %s339
      %p348 = scmp.eq.s32.totalorder %s38, 0
      %p349 = por %p347, %p348
      %p350 = scmp.ne.s32.totalorder %s338, %s339
      %p351 = scmp.eq.s32.totalorder %s39, 2
      %p352 = por %p350, %p351
      %p354 = scmp.ne.s32.totalorder %s339, %s353
      %p355 = scmp.eq.s32.totalorder %s39, 0
      %p356 = por %p354, %p355
      %s358 = sadd.s32 %s357, 1
      %p361 = scmp.eq.s32.totalorder %s33, 2
      %p362 = scmp.ne.s32.totalorder %s357, %s359
      %p363 = scmp.eq.s32.totalorder %s33, 0
      %p364 = por %p362, %p363
      %p365 = scmp.ne.s32.totalorder %s357, %s359
      %p366 = scmp.eq.s32.totalorder %s38, 2
      %p367 = por %p365, %p366
      %p368 = scmp.ne.s32.totalorder %s359, %s360
      %p369 = scmp.eq.s32.totalorder %s38, 0
      %p370 = por %p368, %p369
      %p371 = scmp.ne.s32.totalorder %s359, %s360
      %p372 = scmp.eq.s32.totalorder %s39, 2
      %p373 = por %p371, %p372
      %p375 = scmp.ne.s32.totalorder %s360, %s374
      %p376 = scmp.eq.s32.totalorder %s39, 0
      %p377 = por %p375, %p376
      %s379 = sadd.s32 %s378, 1
      %p382 = scmp.eq.s32.totalorder %s33, 2
      %p383 = scmp.ne.s32.totalorder %s378, %s380
      %p384 = scmp.eq.s32.totalorder %s33, 0
      %p385 = por %p383, %p384
      %p386 = scmp.ne.s32.totalorder %s378, %s380
      %p387 = scmp.eq.s32.totalorder %s38, 2
      %p388 = por %p386, %p387
      %p389 = scmp.ne.s32.totalorder %s380, %s381
      %p390 = scmp.eq.s32.totalorder %s38, 0
      %p391 = por %p389, %p390
      %p392 = scmp.ne.s32.totalorder %s380, %s381
      %p393 = scmp.eq.s32.totalorder %s39, 2
      %p394 = por %p392, %p393
      %p396 = scmp.ne.s32.totalorder %s381, %s395
      %p397 = scmp.eq.s32.totalorder %s39, 0
      %p398 = por %p396, %p397
      %s400 = sadd.s32 %s399, 1
      %p403 = scmp.eq.s32.totalorder %s33, 2
      %p404 = scmp.ne.s32.totalorder %s399, %s401
      %p405 = scmp.eq.s32.totalorder %s33, 0
      %p406 = por %p404, %p405
      %p407 = scmp.ne.s32.totalorder %s399, %s401
      %p408 = scmp.eq.s32.totalorder %s38, 2
      %p409 = por %p407, %p408
      %p410 = scmp.ne.s32.totalorder %s401, %s402
      %p411 = scmp.eq.s32.totalorder %s38, 0
      %p412 = por %p410, %p411
      %p413 = scmp.ne.s32.totalorder %s401, %s402
      %p414 = scmp.eq.s32.totalorder %s39, 2
      %p415 = por %p413, %p414
      %p417 = scmp.ne.s32.totalorder %s402, %s416
      %p418 = scmp.eq.s32.totalorder %s39, 0
      %p419 = por %p417, %p418
      %s421 = sadd.s32 %s420, 1
      %p424 = scmp.eq.s32.totalorder %s33, 2
      %p425 = scmp.ne.s32.totalorder %s420, %s422
      %p426 = scmp.eq.s32.totalorder %s33, 0
      %p427 = por %p425, %p426
      %p428 = scmp.ne.s32.totalorder %s420, %s422
      %p429 = scmp.eq.s32.totalorder %s38, 2
      %p430 = por %p428, %p429
      %p431 = scmp.ne.s32.totalorder %s422, %s423
      %p432 = scmp.eq.s32.totalorder %s38, 0
      %p433 = por %p431, %p432
      %p434 = scmp.ne.s32.totalorder %s422, %s423
      %p435 = scmp.eq.s32.totalorder %s39, 2
      %p436 = por %p434, %p435
      %p438 = scmp.ne.s32.totalorder %s423, %s437
      %p439 = scmp.eq.s32.totalorder %s39, 0
      %p440 = por %p438, %p439
      %p441 = scmp.le.s32.totalorder 1, %s33
      %p442 = scmp.lt.s32.totalorder %s33, 4
      %p443 = pnand %p441, %p442
      %p444 = pneg %p443
      // Predicated region
      $region9: #{tpu_custom_call.1} parent=5 // pred_check
        _
      $region10: #{tpu_custom_call.1} parent=5 // pred_check_branch
        %446 = sbr.rel (%p443) target = $region12
      $region11: #{tpu_custom_call.1} parent=5 // pred_region
        %s447 = ssub.s32 %s33, 1
        // Predicated region
        $region13: #{tpu_custom_call.1} parent=11 // pred_check
          %p448 = pneg %p71
        $region14: #{tpu_custom_call.1} parent=11 // pred_check_branch
          %450 = sbr.rel (%p448) target = $region16
        $region15: #{tpu_custom_call.1} parent=11 // pred_region
          %s452 = ssub.s32 64, 64
          %453 = vsyncadd [#allocation6], %s452
          %s454 = smul.addr %s43, 64
          %s455 = scalar_lea.hbm %s0, %s454
          %s457 = sshll.u32 [#allocation5], 4
          %s458 = int_to_ptr.vmem [resolvable:$true] %s457
          %460 = dma.hbm_to_vmem [thread:$0]  %s455, 64, %s458, [#allocation6]
        $region16: #{tpu_custom_call.1} parent=11 // pred_fallthru
          _
        // Predicated region
        $region17: #{tpu_custom_call.1} parent=11 // pred_check
          %p461 = pneg %p92
        $region18: #{tpu_custom_call.1} parent=11 // pred_check_branch
          %463 = sbr.rel (%p461) target = $region20
        $region19: #{tpu_custom_call.1} parent=11 // pred_region
          %s465 = ssub.s32 64, 64
          %466 = vsyncadd [#allocation9], %s465
          %s468 = sshll.u32 [#allocation8], 4
          %s469 = int_to_ptr.vmem [resolvable:$true] %s468
          %471 = dma.hbm_to_vmem [thread:$0]  %s1, 64, %s469, [#allocation9]
        $region20: #{tpu_custom_call.1} parent=11 // pred_fallthru
          _
        // Predicated region
        $region21: #{tpu_custom_call.1} parent=11 // pred_check
          %p472 = pneg %p113
        $region22: #{tpu_custom_call.1} parent=11 // pred_check_branch
          %474 = sbr.rel (%p472) target = $region24
        $region23: #{tpu_custom_call.1} parent=11 // pred_region
          %s476 = ssub.s32 1024, 1024
          %477 = vsyncadd [#allocation9], %s476
          %s478 = sshll.u32 [#allocation10], 4
          %s479 = int_to_ptr.vmem [resolvable:$true] %s478
          %484 = dma.hbm_to_vmem [thread:$0]  %s2, 1024, %s479, [#allocation9], 64, 64, 4
        $region24: #{tpu_custom_call.1} parent=11 // pred_fallthru
          _
        // Predicated region
        $region25: #{tpu_custom_call.1} parent=11 // pred_check
          %p485 = pneg %p134
        $region26: #{tpu_custom_call.1} parent=11 // pred_check_branch
          %487 = sbr.rel (%p485) target = $region28
        $region27: #{tpu_custom_call.1} parent=11 // pred_region
          %s489 = ssub.s32 2048, 2048
          %490 = vsyncadd [#allocation12], %s489
          %s491 = sshll.u32 [#allocation11], 4
          %s492 = int_to_ptr.vmem [resolvable:$true] %s491
          %497 = dma.hbm_to_vmem [thread:$0]  %s3, 2048, %s492, [#allocation12], 64, 64, 4
        $region28: #{tpu_custom_call.1} parent=11 // pred_fallthru
          _
        // Predicated region
        $region29: #{tpu_custom_call.1} parent=11 // pred_check
          %p498 = pneg %p155
        $region30: #{tpu_custom_call.1} parent=11 // pred_check_branch
          %500 = sbr.rel (%p498) target = $region32
        $region31: #{tpu_custom_call.1} parent=11 // pred_region
          %s502 = ssub.s32 48, 48
          %503 = vsyncadd [#allocation12], %s502
          %s504 = sshll.u32 [#allocation13], 4
          %s505 = int_to_ptr.vmem [resolvable:$true] %s504
          %510 = dma.hbm_to_vmem [thread:$0]  %s4, 48, %s505, [#allocation12], 16, 16, 1
        $region32: #{tpu_custom_call.1} parent=11 // pred_fallthru
          _
        // Predicated region
        $region33: #{tpu_custom_call.1} parent=11 // pred_check
          %p511 = pneg %p181
        $region34: #{tpu_custom_call.1} parent=11 // pred_check_branch
          %513 = sbr.rel (%p511) target = $region36
        $region35: #{tpu_custom_call.1} parent=11 // pred_region
          %s515 = ssub.s32 128, 128
          %516 = vsyncadd [#allocation15], %s515
          %s517 = smul.addr %s43, 128
          %s518 = scalar_lea.hbm %s5, %s517
          %s520 = sshll.u32 [#allocation14], 4
          %s521 = int_to_ptr.vmem [resolvable:$true] %s520
          %523 = dma.hbm_to_vmem [thread:$0]  %s518, 128, %s521, [#allocation15]
        $region36: #{tpu_custom_call.1} parent=11 // pred_fallthru
          _
        // Predicated region
        $region37: #{tpu_custom_call.1} parent=11 // pred_check
          %p524 = pneg %p202
        $region38: #{tpu_custom_call.1} parent=11 // pred_check_branch
          %526 = sbr.rel (%p524) target = $region40
        $region39: #{tpu_custom_call.1} parent=11 // pred_region
          %s528 = ssub.s32 32, 32
          %529 = vsyncadd [#allocation15], %s528
          %s531 = sshll.u32 [#allocation16], 4
          %s532 = int_to_ptr.vmem [resolvable:$true] %s531
          %534 = dma.hbm_to_vmem [thread:$0]  %s6, 32, %s532, [#allocation15]
        $region40: #{tpu_custom_call.1} parent=11 // pred_fallthru
          _
        // Predicated region
        $region41: #{tpu_custom_call.1} parent=11 // pred_check
          %p535 = pneg %p223
        $region42: #{tpu_custom_call.1} parent=11 // pred_check_branch
          %537 = sbr.rel (%p535) target = $region44
        $region43: #{tpu_custom_call.1} parent=11 // pred_region
          %s539 = ssub.s32 2048, 2048
          %540 = vsyncadd [#allocation18], %s539
          %s541 = sshll.u32 [#allocation17], 4
          %s542 = int_to_ptr.vmem [resolvable:$true] %s541
          %547 = dma.hbm_to_vmem [thread:$0]  %s7, 2048, %s542, [#allocation18], 128, 128, 8
        $region44: #{tpu_custom_call.1} parent=11 // pred_fallthru
          _
        // Predicated region
        $region45: #{tpu_custom_call.1} parent=11 // pred_check
          %p548 = pneg %p244
        $region46: #{tpu_custom_call.1} parent=11 // pred_check_branch
          %550 = sbr.rel (%p548) target = $region48
        $region47: #{tpu_custom_call.1} parent=11 // pred_region
          %s552 = ssub.s32 2048, 2048
          %553 = vsyncadd [#allocation18], %s552
          %s554 = sshll.u32 [#allocation19], 4
          %s555 = int_to_ptr.vmem [resolvable:$true] %s554
          %560 = dma.hbm_to_vmem [thread:$0]  %s8, 2048, %s555, [#allocation18], 128, 128, 8
        $region48: #{tpu_custom_call.1} parent=11 // pred_fallthru
          _
        // Predicated region
        $region49: #{tpu_custom_call.1} parent=11 // pred_check
          %p561 = pneg %p265
        $region50: #{tpu_custom_call.1} parent=11 // pred_check_branch
          %563 = sbr.rel (%p561) target = $region52
        $region51: #{tpu_custom_call.1} parent=11 // pred_region
          %s565 = ssub.s32 16, 16
          %566 = vsyncadd [#allocation21], %s565
          %s568 = sshll.u32 [#allocation20], 4
          %s569 = int_to_ptr.vmem [resolvable:$true] %s568
          %571 = dma.hbm_to_vmem [thread:$0]  %s9, 16, %s569, [#allocation21]
        $region52: #{tpu_custom_call.1} parent=11 // pred_fallthru
          _
        // Predicated region
        $region53: #{tpu_custom_call.1} parent=11 // pred_check
          %p572 = pneg %p286
        $region54: #{tpu_custom_call.1} parent=11 // pred_check_branch
          %574 = sbr.rel (%p572) target = $region56
        $region55: #{tpu_custom_call.1} parent=11 // pred_region
          %s576 = ssub.s32 2048, 2048
          %577 = vsyncadd [#allocation21], %s576
          %s578 = sshll.u32 [#allocation22], 4
          %s579 = int_to_ptr.vmem [resolvable:$true] %s578
          %584 = dma.hbm_to_vmem [thread:$0]  %s10, 2048, %s579, [#allocation21], 128, 128, 8
        $region56: #{tpu_custom_call.1} parent=11 // pred_fallthru
          _
        // Predicated region
        $region57: #{tpu_custom_call.1} parent=11 // pred_check
          %p585 = pneg %p307
        $region58: #{tpu_custom_call.1} parent=11 // pred_check_branch
          %587 = sbr.rel (%p585) target = $region60
        $region59: #{tpu_custom_call.1} parent=11 // pred_region
          %s589 = ssub.s32 2048, 2048
          %590 = vsyncadd [#allocation24], %s589
          %s591 = sshll.u32 [#allocation23], 4
          %s592 = int_to_ptr.vmem [resolvable:$true] %s591
          %597 = dma.hbm_to_vmem [thread:$0]  %s11, 2048, %s592, [#allocation24], 128, 128, 8
        $region60: #{tpu_custom_call.1} parent=11 // pred_fallthru
          _
        // Predicated region
        $region61: #{tpu_custom_call.1} parent=11 // pred_check
          %p598 = pneg %p328
        $region62: #{tpu_custom_call.1} parent=11 // pred_check_branch
          %600 = sbr.rel (%p598) target = $region64
        $region63: #{tpu_custom_call.1} parent=11 // pred_region
          %s602 = ssub.s32 16, 16
          %603 = vsyncadd [#allocation24], %s602
          %s605 = sshll.u32 [#allocation25], 4
          %s606 = int_to_ptr.vmem [resolvable:$true] %s605
          %608 = dma.hbm_to_vmem [thread:$0]  %s12, 16, %s606, [#allocation24]
        $region64: #{tpu_custom_call.1} parent=11 // pred_fallthru
          _
        // Predicated region
        $region65: #{tpu_custom_call.1} parent=11 // pred_check
          %p609 = pneg %p349
        $region66: #{tpu_custom_call.1} parent=11 // pred_check_branch
          %611 = sbr.rel (%p609) target = $region68
        $region67: #{tpu_custom_call.1} parent=11 // pred_region
          %s613 = ssub.s32 16, 16
          %614 = vsyncadd [#allocation27], %s613
          %s616 = sshll.u32 [#allocation26], 4
          %s617 = int_to_ptr.vmem [resolvable:$true] %s616
          %619 = dma.hbm_to_vmem [thread:$0]  %s13, 16, %s617, [#allocation27]
        $region68: #{tpu_custom_call.1} parent=11 // pred_fallthru
          _
        // Predicated region
        $region69: #{tpu_custom_call.1} parent=11 // pred_check
          %p620 = pneg %p370
        $region70: #{tpu_custom_call.1} parent=11 // pred_check_branch
          %622 = sbr.rel (%p620) target = $region72
        $region71: #{tpu_custom_call.1} parent=11 // pred_region
          %s624 = ssub.s32 2048, 2048
          %625 = vsyncadd [#allocation27], %s624
          %s626 = sshll.u32 [#allocation28], 4
          %s627 = int_to_ptr.vmem [resolvable:$true] %s626
          %632 = dma.hbm_to_vmem [thread:$0]  %s14, 2048, %s627, [#allocation27], 128, 128, 8
        $region72: #{tpu_custom_call.1} parent=11 // pred_fallthru
          _
        // Predicated region
        $region73: #{tpu_custom_call.1} parent=11 // pred_check
          %p633 = pneg %p391
        $region74: #{tpu_custom_call.1} parent=11 // pred_check_branch
          %635 = sbr.rel (%p633) target = $region76
        $region75: #{tpu_custom_call.1} parent=11 // pred_region
          %s637 = ssub.s32 2048, 2048
          %638 = vsyncadd [#allocation30], %s637
          %s639 = sshll.u32 [#allocation29], 4
          %s640 = int_to_ptr.vmem [resolvable:$true] %s639
          %645 = dma.hbm_to_vmem [thread:$0]  %s15, 2048, %s640, [#allocation30], 128, 128, 8
        $region76: #{tpu_custom_call.1} parent=11 // pred_fallthru
          _
        // Predicated region
        $region77: #{tpu_custom_call.1} parent=11 // pred_check
          %p646 = pneg %p412
        $region78: #{tpu_custom_call.1} parent=11 // pred_check_branch
          %648 = sbr.rel (%p646) target = $region80
        $region79: #{tpu_custom_call.1} parent=11 // pred_region
          %s650 = ssub.s32 16, 16
          %651 = vsyncadd [#allocation30], %s650
          %s653 = sshll.u32 [#allocation31], 4
          %s654 = int_to_ptr.vmem [resolvable:$true] %s653
          %656 = dma.hbm_to_vmem [thread:$0]  %s16, 16, %s654, [#allocation30]
        $region80: #{tpu_custom_call.1} parent=11 // pred_fallthru
          _
      $region12: #{tpu_custom_call.1} parent=5 // pred_fallthru
        _
      %p657 = scmp.lt.s32.totalorder %s33, 3
      // Predicated region
      $region81: #{tpu_custom_call.1} parent=5 // pred_check
        %p658 = pneg %p657
      $region82: #{tpu_custom_call.1} parent=5 // pred_check_branch
        %660 = sbr.rel (%p658) target = $region84
      $region83: #{tpu_custom_call.1} parent=5 // pred_region
        _
      $region84: #{tpu_custom_call.1} parent=5 // pred_fallthru
        _
      %p661 = scmp.le.s32.totalorder 1, %s33
      %p662 = scmp.lt.s32.totalorder %s33, 4
      %p663 = pnand %p661, %p662
      %p664 = pneg %p663
      // Predicated region
      $region85: #{tpu_custom_call.1} parent=5 // pred_check
        _
      $region86: #{tpu_custom_call.1} parent=5 // pred_check_branch
        %666 = sbr.rel (%p663) target = $region88
      $region87: #{tpu_custom_call.1} parent=5 // pred_region
        %s667 = ssub.s32 %s33, 1
        // Predicated region
        $region89: #{tpu_custom_call.1} parent=87 // pred_check
          %p668 = pneg %p71
        $region90: #{tpu_custom_call.1} parent=87 // pred_check_branch
          %670 = sbr.rel (%p668) target = $region92
        $region91: #{tpu_custom_call.1} parent=87 // pred_region
          %671 = dma.done [#allocation6], 64
        $region92: #{tpu_custom_call.1} parent=87 // pred_fallthru
          _
        // Predicated region
        $region93: #{tpu_custom_call.1} parent=87 // pred_check
          %p672 = pneg %p92
        $region94: #{tpu_custom_call.1} parent=87 // pred_check_branch
          %674 = sbr.rel (%p672) target = $region96
        $region95: #{tpu_custom_call.1} parent=87 // pred_region
          %675 = dma.done [#allocation9], 64
        $region96: #{tpu_custom_call.1} parent=87 // pred_fallthru
          _
        // Predicated region
        $region97: #{tpu_custom_call.1} parent=87 // pred_check
          %p676 = pneg %p113
        $region98: #{tpu_custom_call.1} parent=87 // pred_check_branch
          %678 = sbr.rel (%p676) target = $region100
        $region99: #{tpu_custom_call.1} parent=87 // pred_region
          %679 = dma.done [#allocation9], 1024
        $region100: #{tpu_custom_call.1} parent=87 // pred_fallthru
          _
        // Predicated region
        $region101: #{tpu_custom_call.1} parent=87 // pred_check
          %p680 = pneg %p134
        $region102: #{tpu_custom_call.1} parent=87 // pred_check_branch
          %682 = sbr.rel (%p680) target = $region104
        $region103: #{tpu_custom_call.1} parent=87 // pred_region
          %683 = dma.done [#allocation12], 2048
        $region104: #{tpu_custom_call.1} parent=87 // pred_fallthru
          _
        // Predicated region
        $region105: #{tpu_custom_call.1} parent=87 // pred_check
          %p684 = pneg %p155
        $region106: #{tpu_custom_call.1} parent=87 // pred_check_branch
          %686 = sbr.rel (%p684) target = $region108
        $region107: #{tpu_custom_call.1} parent=87 // pred_region
          %687 = dma.done [#allocation12], 48
        $region108: #{tpu_custom_call.1} parent=87 // pred_fallthru
          _
        // Predicated region
        $region109: #{tpu_custom_call.1} parent=87 // pred_check
          %p688 = pneg %p181
        $region110: #{tpu_custom_call.1} parent=87 // pred_check_branch
          %690 = sbr.rel (%p688) target = $region112
        $region111: #{tpu_custom_call.1} parent=87 // pred_region
          %691 = dma.done [#allocation15], 128
        $region112: #{tpu_custom_call.1} parent=87 // pred_fallthru
          _
        // Predicated region
        $region113: #{tpu_custom_call.1} parent=87 // pred_check
          %p692 = pneg %p202
        $region114: #{tpu_custom_call.1} parent=87 // pred_check_branch
          %694 = sbr.rel (%p692) target = $region116
        $region115: #{tpu_custom_call.1} parent=87 // pred_region
          %695 = dma.done [#allocation15], 32
        $region116: #{tpu_custom_call.1} parent=87 // pred_fallthru
          _
        // Predicated region
        $region117: #{tpu_custom_call.1} parent=87 // pred_check
          %p696 = pneg %p223
        $region118: #{tpu_custom_call.1} parent=87 // pred_check_branch
          %698 = sbr.rel (%p696) target = $region120
        $region119: #{tpu_custom_call.1} parent=87 // pred_region
          %699 = dma.done [#allocation18], 2048
        $region120: #{tpu_custom_call.1} parent=87 // pred_fallthru
          _
        // Predicated region
        $region121: #{tpu_custom_call.1} parent=87 // pred_check
          %p700 = pneg %p244
        $region122: #{tpu_custom_call.1} parent=87 // pred_check_branch
          %702 = sbr.rel (%p700) target = $region124
        $region123: #{tpu_custom_call.1} parent=87 // pred_region
          %703 = dma.done [#allocation18], 2048
        $region124: #{tpu_custom_call.1} parent=87 // pred_fallthru
          _
        // Predicated region
        $region125: #{tpu_custom_call.1} parent=87 // pred_check
          %p704 = pneg %p265
        $region126: #{tpu_custom_call.1} parent=87 // pred_check_branch
          %706 = sbr.rel (%p704) target = $region128
        $region127: #{tpu_custom_call.1} parent=87 // pred_region
          %707 = dma.done [#allocation21], 16
        $region128: #{tpu_custom_call.1} parent=87 // pred_fallthru
          _
        // Predicated region
        $region129: #{tpu_custom_call.1} parent=87 // pred_check
          %p708 = pneg %p286
        $region130: #{tpu_custom_call.1} parent=87 // pred_check_branch
          %710 = sbr.rel (%p708) target = $region132
        $region131: #{tpu_custom_call.1} parent=87 // pred_region
          %711 = dma.done [#allocation21], 2048
        $region132: #{tpu_custom_call.1} parent=87 // pred_fallthru
          _
        // Predicated region
        $region133: #{tpu_custom_call.1} parent=87 // pred_check
          %p712 = pneg %p307
        $region134: #{tpu_custom_call.1} parent=87 // pred_check_branch
          %714 = sbr.rel (%p712) target = $region136
        $region135: #{tpu_custom_call.1} parent=87 // pred_region
          %715 = dma.done [#allocation24], 2048
        $region136: #{tpu_custom_call.1} parent=87 // pred_fallthru
          _
        // Predicated region
        $region137: #{tpu_custom_call.1} parent=87 // pred_check
          %p716 = pneg %p328
        $region138: #{tpu_custom_call.1} parent=87 // pred_check_branch
          %718 = sbr.rel (%p716) target = $region140
        $region139: #{tpu_custom_call.1} parent=87 // pred_region
          %719 = dma.done [#allocation24], 16
        $region140: #{tpu_custom_call.1} parent=87 // pred_fallthru
          _
        // Predicated region
        $region141: #{tpu_custom_call.1} parent=87 // pred_check
          %p720 = pneg %p349
        $region142: #{tpu_custom_call.1} parent=87 // pred_check_branch
          %722 = sbr.rel (%p720) target = $region144
        $region143: #{tpu_custom_call.1} parent=87 // pred_region
          %723 = dma.done [#allocation27], 16
        $region144: #{tpu_custom_call.1} parent=87 // pred_fallthru
          _
        // Predicated region
        $region145: #{tpu_custom_call.1} parent=87 // pred_check
          %p724 = pneg %p370
        $region146: #{tpu_custom_call.1} parent=87 // pred_check_branch
          %726 = sbr.rel (%p724) target = $region148
        $region147: #{tpu_custom_call.1} parent=87 // pred_region
          %727 = dma.done [#allocation27], 2048
        $region148: #{tpu_custom_call.1} parent=87 // pred_fallthru
          _
        // Predicated region
        $region149: #{tpu_custom_call.1} parent=87 // pred_check
          %p728 = pneg %p391
        $region150: #{tpu_custom_call.1} parent=87 // pred_check_branch
          %730 = sbr.rel (%p728) target = $region152
        $region151: #{tpu_custom_call.1} parent=87 // pred_region
          %731 = dma.done [#allocation30], 2048
        $region152: #{tpu_custom_call.1} parent=87 // pred_fallthru
          _
        // Predicated region
        $region153: #{tpu_custom_call.1} parent=87 // pred_check
          %p732 = pneg %p412
        $region154: #{tpu_custom_call.1} parent=87 // pred_check_branch
          %734 = sbr.rel (%p732) target = $region156
        $region155: #{tpu_custom_call.1} parent=87 // pred_region
          %735 = dma.done [#allocation30], 16
        $region156: #{tpu_custom_call.1} parent=87 // pred_fallthru
          _
        %p736 = pneg %p71
        %p737 = pneg %p68
        %p738 = pneg %p92
        %p739 = pneg %p89
        %p740 = pneg %p113
        %p741 = pneg %p110
        %p742 = pneg %p134
        %p743 = pneg %p131
        %p744 = pneg %p155
        %p745 = pneg %p152
        %p746 = pneg %p181
        %p747 = pneg %p178
        %p748 = pneg %p202
        %p749 = pneg %p199
        %p750 = pneg %p223
        %p751 = pneg %p220
        %p752 = pneg %p244
        %p753 = pneg %p241
        %p754 = pneg %p265
        %p755 = pneg %p262
        %p756 = pneg %p286
        %p757 = pneg %p283
        %p758 = pneg %p307
        %p759 = pneg %p304
        %p760 = pneg %p328
        %p761 = pneg %p325
        %p762 = pneg %p349
        %p763 = pneg %p346
        %p764 = pneg %p370
        %p765 = pneg %p367
        %p766 = pneg %p391
        %p767 = pneg %p388
        %p768 = pneg %p412
        %p769 = pneg %p409
        %p770 = pneg %p433
        %p771 = pneg %p430
        %p773 = scmp.eq.s32.totalorder %s43, 0
        %p774 = scmp.eq.s32.totalorder %s42, 0
        %p775 = pnand %p773, %p774
        %p776 = pneg %p775
        // Predicated region
        $region157: #{tpu_custom_call.1} parent=87 // pred_check
          _
        $region158: #{tpu_custom_call.1} parent=87 // pred_check_branch
          %778 = sbr.rel (%p775) target = $region160
        $region159: #{tpu_custom_call.1} parent=87 // pred_region
          %v779 = vld [vmem:[#allocation8] sm:$0xf]
          %v780 = vld [vmem:[#allocation10] sm:$0xf]
          %v781 = vld [vmem:[#allocation10 + $0x4] sm:$0xf]
          %v782 = vld [vmem:[#allocation10 + $0x8] sm:$0xf]
          %v783 = vld [vmem:[#allocation10 + $0xc] sm:$0xf]
          %v784 = vld [vmem:[#allocation10 + $0x10] sm:$0xf]
          %v785 = vld [vmem:[#allocation10 + $0x14] sm:$0xf]
          %v786 = vld [vmem:[#allocation10 + $0x18] sm:$0xf]
          %v787 = vld [vmem:[#allocation10 + $0x1c] sm:$0xf]
          %v788 = vld [vmem:[#allocation10 + $0x20] sm:$0xf]
          %v789 = vld [vmem:[#allocation10 + $0x24] sm:$0xf]
          %v790 = vld [vmem:[#allocation10 + $0x28] sm:$0xf]
          %v791 = vld [vmem:[#allocation10 + $0x2c] sm:$0xf]
          %v792 = vld [vmem:[#allocation10 + $0x30] sm:$0xf]
          %v793 = vld [vmem:[#allocation10 + $0x34] sm:$0xf]
          %v794 = vld [vmem:[#allocation10 + $0x38] sm:$0xf]
          %v795 = vld [vmem:[#allocation10 + $0x3c] sm:$0xf]
          %v812 = vunpack.c.l.b16 %v780
          %v813 = vunpack.c.l.b16 %v781
          %v814 = vunpack.c.l.b16 %v782
          %v815 = vunpack.c.l.b16 %v783
          %v816 = vunpack.c.l.b16 %v784
          %v817 = vunpack.c.l.b16 %v785
          %v818 = vunpack.c.l.b16 %v786
          %v819 = vunpack.c.l.b16 %v787
          %v820 = vunpack.c.l.b16 %v788
          %v821 = vunpack.c.l.b16 %v789
          %v822 = vunpack.c.l.b16 %v790
          %v823 = vunpack.c.l.b16 %v791
          %v824 = vunpack.c.l.b16 %v792
          %v825 = vunpack.c.l.b16 %v793
          %v826 = vunpack.c.l.b16 %v794
          %v827 = vunpack.c.l.b16 %v795
          %v828 = vpack.c.b16 %v813, %v812
          %v829 = vpack.c.b16 %v815, %v814
          %v830 = vpack.c.b16 %v817, %v816
          %v831 = vpack.c.b16 %v819, %v818
          %v832 = vpack.c.b16 %v821, %v820
          %v833 = vpack.c.b16 %v823, %v822
          %v834 = vpack.c.b16 %v825, %v824
          %v835 = vpack.c.b16 %v827, %v826
          %844 = vmatprep.subr.bf16.mxu0 0
          %845 = vmatpush1.bf16.msra.mxu0 %v828
          %846 = vmatprep.subr.bf16.mxu0 0
          %847 = vmatpush1.bf16.msra.mxu0 %v829
          %848 = vmatprep.subr.bf16.mxu0 0
          %849 = vmatpush1.bf16.msra.mxu0 %v830
          %850 = vmatprep.subr.bf16.mxu0 0
          %851 = vmatpush1.bf16.msra.mxu0 %v831
          %852 = vmatprep.subr.bf16.mxu0 0
          %853 = vmatpush1.bf16.msra.mxu0 %v832
          %854 = vmatprep.subr.bf16.mxu0 0
          %855 = vmatpush1.bf16.msra.mxu0 %v833
          %856 = vmatprep.subr.bf16.mxu0 0
          %857 = vmatpush1.bf16.msra.mxu0 %v834
          %858 = vmatprep.subr.bf16.mxu0 0
          %859 = vmatpush1.bf16.msra.mxu0 %v835
          %860 = vmatprep.subr.bf16.mxu0 0
          %861 = vmatpush1.bf16.msra.mxu0 0
          %862 = vmatprep.subr.bf16.mxu0 0
          %863 = vmatpush1.bf16.msra.mxu0 0
          %864 = vmatprep.subr.bf16.mxu0 0
          %865 = vmatpush1.bf16.msra.mxu0 0
          %866 = vmatprep.subr.bf16.mxu0 0
          %867 = vmatpush1.bf16.msra.mxu0 0
          %868 = vmatprep.subr.bf16.mxu0 0
          %869 = vmatpush1.bf16.msra.mxu0 0
          %870 = vmatprep.subr.bf16.mxu0 0
          %871 = vmatpush1.bf16.msra.mxu0 0
          %872 = vmatprep.subr.bf16.mxu0 0
          %873 = vmatpush1.bf16.msra.mxu0 0
          %874 = vmatprep.subr.bf16.mxu0 0
          %875 = vmatpush1.bf16.msra.mxu0 0
          %876 = vmatprep.mubr.bf16.mxu0 0
          %877 = vmatmul.mubr.bf16.gmra.mrb[0].mxu0 %v779
          %v878 = vpop.f32.mrb[0].mxu0
          %v879 = vadd.f32 0.0, %v878
          %v880 = vpop.f32.mrb[0].mxu0
          %v881 = vpop.f32.mrb[0].mxu0
          %v882 = vpop.f32.mrb[0].mxu0
          %883 = vdwg.mxu0
          %v884 = vpack.c.bf16 %v879, %v879
          %885 = vst [vmem:[#allocation3] sm:$0xf] %v884
        $region160: #{tpu_custom_call.1} parent=87 // pred_fallthru
          _
        %p886 = scmp.gt.s32.totalorder %s42, 0
        %p887 = pnand %p773, %p886
        %p888 = pneg %p887
        // Predicated region
        $region161: #{tpu_custom_call.1} parent=87 // pred_check
          _
        $region162: #{tpu_custom_call.1} parent=87 // pred_check_branch
          %890 = sbr.rel (%p887) target = $region164
        $region163: #{tpu_custom_call.1} parent=87 // pred_region
          %s891 = ssub.s32 %s42, 1
          %p892 = scmp.gt.s32.totalorder %s891, 0
          %s893 = scalar_select %p892, %s891, 0
          %v894 = vld [vmem:[#allocation2] sm:$0xf]
          %s895 = smul.u32 %s893, 16
          %s896 = smul.addr %s895, 4
          %s897 = scalar_lea.vmem [#allocation11], %s896
          %v898 = vld [vmem:[%s897] sm:$0xf]
          %v899 = vld [vmem:[%s897 + $0x4] sm:$0xf]
          %v900 = vld [vmem:[%s897 + $0x8] sm:$0xf]
          %v901 = vld [vmem:[%s897 + $0xc] sm:$0xf]
          %v902 = vld [vmem:[%s897 + $0x10] sm:$0xf]
          %v903 = vld [vmem:[%s897 + $0x14] sm:$0xf]
          %v904 = vld [vmem:[%s897 + $0x18] sm:$0xf]
          %v905 = vld [vmem:[%s897 + $0x1c] sm:$0xf]
          %v906 = vld [vmem:[%s897 + $0x20] sm:$0xf]
          %v907 = vld [vmem:[%s897 + $0x24] sm:$0xf]
          %v908 = vld [vmem:[%s897 + $0x28] sm:$0xf]
          %v909 = vld [vmem:[%s897 + $0x2c] sm:$0xf]
          %v910 = vld [vmem:[%s897 + $0x30] sm:$0xf]
          %v911 = vld [vmem:[%s897 + $0x34] sm:$0xf]
          %v912 = vld [vmem:[%s897 + $0x38] sm:$0xf]
          %v913 = vld [vmem:[%s897 + $0x3c] sm:$0xf]
          %v930 = vunpack.c.l.b16 %v898
          %v931 = vunpack.c.l.b16 %v899
          %v932 = vunpack.c.l.b16 %v900
          %v933 = vunpack.c.l.b16 %v901
          %v934 = vunpack.c.l.b16 %v902
          %v935 = vunpack.c.l.b16 %v903
          %v936 = vunpack.c.l.b16 %v904
          %v937 = vunpack.c.l.b16 %v905
          %v938 = vunpack.c.l.b16 %v906
          %v939 = vunpack.c.l.b16 %v907
          %v940 = vunpack.c.l.b16 %v908
          %v941 = vunpack.c.l.b16 %v909
          %v942 = vunpack.c.l.b16 %v910
          %v943 = vunpack.c.l.b16 %v911
          %v944 = vunpack.c.l.b16 %v912
          %v945 = vunpack.c.l.b16 %v913
          %v946 = vpack.c.b16 %v931, %v930
          %v947 = vpack.c.b16 %v933, %v932
          %v948 = vpack.c.b16 %v935, %v934
          %v949 = vpack.c.b16 %v937, %v936
          %v950 = vpack.c.b16 %v939, %v938
          %v951 = vpack.c.b16 %v941, %v940
          %v952 = vpack.c.b16 %v943, %v942
          %v953 = vpack.c.b16 %v945, %v944
          %962 = vmatprep.subr.bf16.mxu0 0
          %963 = vmatpush1.bf16.msra.mxu0 %v946
          %964 = vmatprep.subr.bf16.mxu0 0
          %965 = vmatpush1.bf16.msra.mxu0 %v947
          %966 = vmatprep.subr.bf16.mxu0 0
          %967 = vmatpush1.bf16.msra.mxu0 %v948
          %968 = vmatprep.subr.bf16.mxu0 0
          %969 = vmatpush1.bf16.msra.mxu0 %v949
          %970 = vmatprep.subr.bf16.mxu0 0
          %971 = vmatpush1.bf16.msra.mxu0 %v950
          %972 = vmatprep.subr.bf16.mxu0 0
          %973 = vmatpush1.bf16.msra.mxu0 %v951
          %974 = vmatprep.subr.bf16.mxu0 0
          %975 = vmatpush1.bf16.msra.mxu0 %v952
          %976 = vmatprep.subr.bf16.mxu0 0
          %977 = vmatpush1.bf16.msra.mxu0 %v953
          %978 = vmatprep.subr.bf16.mxu0 0
          %979 = vmatpush1.bf16.msra.mxu0 0
          %980 = vmatprep.subr.bf16.mxu0 0
          %981 = vmatpush1.bf16.msra.mxu0 0
          %982 = vmatprep.subr.bf16.mxu0 0
          %983 = vmatpush1.bf16.msra.mxu0 0
          %984 = vmatprep.subr.bf16.mxu0 0
          %985 = vmatpush1.bf16.msra.mxu0 0
          %986 = vmatprep.subr.bf16.mxu0 0
          %987 = vmatpush1.bf16.msra.mxu0 0
          %988 = vmatprep.subr.bf16.mxu0 0
          %989 = vmatpush1.bf16.msra.mxu0 0
          %990 = vmatprep.subr.bf16.mxu0 0
          %991 = vmatpush1.bf16.msra.mxu0 0
          %992 = vmatprep.subr.bf16.mxu0 0
          %993 = vmatpush1.bf16.msra.mxu0 0
          %994 = vmatprep.mubr.bf16.mxu0 0
          %995 = vmatmul.mubr.bf16.gmra.mrb[0].mxu0 %v894
          %v996 = vpop.f32.mrb[0].mxu0
          %v997 = vadd.f32 0.0, %v996
          %v998 = vpop.f32.mrb[0].mxu0
          %v999 = vpop.f32.mrb[0].mxu0
          %v1000 = vpop.f32.mrb[0].mxu0
          %1001 = vdwg.mxu0
          %v1002 = vpack.c.bf16 %v997, %v997
          %1003 = vst [vmem:[#allocation3] sm:$0xf] %v1002
        $region164: #{tpu_custom_call.1} parent=87 // pred_fallthru
          _
        %p1004 = scmp.eq.s32.totalorder %s42, 2
        %p1005 = pnand %p773, %p1004
        %p1006 = pneg %p1005
        // Predicated region
        $region165: #{tpu_custom_call.1} parent=87 // pred_check
          _
        $region166: #{tpu_custom_call.1} parent=87 // pred_check_branch
          %1008 = sbr.rel (%p1005) target = $region168
        $region167: #{tpu_custom_call.1} parent=87 // pred_region
          %1009 = vst [vmem:[#allocation4] sm:$0x3] -inf
        $region168: #{tpu_custom_call.1} parent=87 // pred_fallthru
          _
        %v1010 = vld [vmem:[#allocation5] sm:$0xf]
        %v1011 = vld [vmem:[#allocation3] sm:$0xf]
        %s1012 = scalar_lea.vmem [#allocation13], %s42
        %v1013 = vld [vmem:[%s1012] sm:$0x1]
        %v1015 = vlaneseq
        %v1016 = vshrl.u32 %v1015, 7
        %v1017 = vsub.s32 0, %v1016
        %v1018 = vrot.slane %v1013, %v1017
        %vm1020 = vcmask 64512
        %v1022 = vsel %vm1020, %v1010, 0
        %vm1024 = vcmask 1043456
        %v1026 = vsel %vm1024, %v1011, 0
        %1028 = vmatprep.subr.bf16.mxu0 0
        %1029 = vmatpush1.bf16.msra.mxu0 %v1026
        %1030 = vmatprep.subr.bf16.mxu0 0
        %1031 = vmatpush1.bf16.msra.mxu0 0
        %1032 = vmatprep.subr.bf16.mxu0 0
        %1033 = vmatpush1.bf16.msra.mxu0 0
        %1034 = vmatprep.subr.bf16.mxu0 0
        %1035 = vmatpush1.bf16.msra.mxu0 0
        %1036 = vmatprep.subr.bf16.mxu0 0
        %1037 = vmatpush1.bf16.msra.mxu0 0
        %1038 = vmatprep.subr.bf16.mxu0 0
        %1039 = vmatpush1.bf16.msra.mxu0 0
        %1040 = vmatprep.subr.bf16.mxu0 0
        %1041 = vmatpush1.bf16.msra.mxu0 0
        %1042 = vmatprep.subr.bf16.mxu0 0
        %1043 = vmatpush1.bf16.msra.mxu0 0
        %1044 = vmatprep.subr.bf16.mxu0 0
        %1045 = vmatpush1.bf16.msra.mxu0 0
        %1046 = vmatprep.subr.bf16.mxu0 0
        %1047 = vmatpush1.bf16.msra.mxu0 0
        %1048 = vmatprep.subr.bf16.mxu0 0
        %1049 = vmatpush1.bf16.msra.mxu0 0
        %1050 = vmatprep.subr.bf16.mxu0 0
        %1051 = vmatpush1.bf16.msra.mxu0 0
        %1052 = vmatprep.subr.bf16.mxu0 0
        %1053 = vmatpush1.bf16.msra.mxu0 0
        %1054 = vmatprep.subr.bf16.mxu0 0
        %1055 = vmatpush1.bf16.msra.mxu0 0
        %1056 = vmatprep.subr.bf16.mxu0 0
        %1057 = vmatpush1.bf16.msra.mxu0 0
        %1058 = vmatprep.subr.bf16.mxu0 0
        %1059 = vmatpush1.bf16.msra.mxu0 0
        %1060 = vmatprep.mubr.bf16.mxu0 0
        %1061 = vmatmul.mubr.bf16.gmra.mrb[0].mxu0 %v1022
        %v1062 = vpop.f32.mrb[0].mxu0
        %v1063 = vadd.f32 %v1018, %v1062
        %v1064 = vpop.f32.mrb[0].mxu0
        %v1065 = vpop.f32.mrb[0].mxu0
        %v1066 = vpop.f32.mrb[0].mxu0
        %1067 = vdwg.mxu0
        %v1068 = vmax.f32 %v1063, 0.0
        %s1069 = smul.u32 %s43, 8
        %v1070 = vpack.c.bf16 %v1068, %v1068
        %s1071 = sshra.s32 %s1069, 3
        %s1072 = sand.u32 %s1069, 7
        %s1073 = smul.addr %s1071, 4
        %s1074 = scalar_lea.vmem [#allocation2], %s1073
        %1075 = vst [vmem:[%s1074] sm:$0xf] %v1070
        // Predicated region
        $region169: #{tpu_custom_call.1} parent=87 // pred_check
          %p1076 = pneg %p1004
        $region170: #{tpu_custom_call.1} parent=87 // pred_check_branch
          %1078 = sbr.rel (%p1076) target = $region172
        $region171: #{tpu_custom_call.1} parent=87 // pred_region
          %v1079 = vld [vmem:[#allocation14] sm:$0xff]
          %1081 = vset.pattern.permute.xlu0 0
          %1082 = vperm.xlu0 %1081, %v1079
          %v1083 = vpop.permute.xlu0 %1082
          %v1085 = vadd.f32 %v1068, %v1083
          %v1086 = vrot.slane %v1085, 4
          %v1087 = vmax.f32 %v1085, %v1086
          %v1088 = vrot.slane %v1087, 2
          %v1089 = vmax.f32 %v1087, %v1088
          %v1090 = vrot.slane %v1089, 1
          %v1091 = vmax.f32 %v1089, %v1090
          %v1092 = vld [vmem:[#allocation4] sm:$0x1]
          %v1093 = vmax.f32 %v1092, %v1091
          %1094 = vst [vmem:[#allocation4] sm:$0x1] %v1093
          %v1095 = vld [vmem:[#allocation14] sm:$0xff]
          %1097 = vset.pattern.permute.xlu0 1
          %1098 = vperm.xlu0 %1097, %v1095
          %v1099 = vpop.permute.xlu0 %1098
          %v1101 = vadd.f32 %v1068, %v1099
          %v1102 = vrot.slane %v1101, 4
          %v1103 = vmax.f32 %v1101, %v1102
          %v1104 = vrot.slane %v1103, 2
          %v1105 = vmax.f32 %v1103, %v1104
          %v1106 = vrot.slane %v1105, 1
          %v1107 = vmax.f32 %v1105, %v1106
          %v1108 = vld [vmem:[#allocation4 + $0x1] sm:$0x1]
          %v1109 = vmax.f32 %v1108, %v1107
          %1110 = vst [vmem:[#allocation4 + $0x1] sm:$0x1] %v1109
        $region172: #{tpu_custom_call.1} parent=87 // pred_fallthru
          _
        // Predicated region
        $region173: #{tpu_custom_call.1} parent=87 // pred_check
          _
        $region174: #{tpu_custom_call.1} parent=87 // pred_check_branch
          %1112 = sbr.rel (%p1005) target = $region176
        $region175: #{tpu_custom_call.1} parent=87 // pred_region
          %v1113 = vld [vmem:[#allocation4] sm:$0x3]
          %v1114 = vld [vmem:[#allocation16] sm:$0x3]
          %v1115 = vld [vmem:[#allocation17] sm:$0xff]
          %v1116 = vld [vmem:[#allocation17 + $0x8] sm:$0xff]
          %v1117 = vld [vmem:[#allocation17 + $0x10] sm:$0xff]
          %v1118 = vld [vmem:[#allocation17 + $0x18] sm:$0xff]
          %v1119 = vld [vmem:[#allocation17 + $0x20] sm:$0xff]
          %v1120 = vld [vmem:[#allocation17 + $0x28] sm:$0xff]
          %v1121 = vld [vmem:[#allocation17 + $0x30] sm:$0xff]
          %v1122 = vld [vmem:[#allocation17 + $0x38] sm:$0xff]
          %v1123 = vld [vmem:[#allocation17 + $0x40] sm:$0xff]
          %v1124 = vld [vmem:[#allocation17 + $0x48] sm:$0xff]
          %v1125 = vld [vmem:[#allocation17 + $0x50] sm:$0xff]
          %v1126 = vld [vmem:[#allocation17 + $0x58] sm:$0xff]
          %v1127 = vld [vmem:[#allocation17 + $0x60] sm:$0xff]
          %v1128 = vld [vmem:[#allocation17 + $0x68] sm:$0xff]
          %v1129 = vld [vmem:[#allocation17 + $0x70] sm:$0xff]
          %v1130 = vld [vmem:[#allocation17 + $0x78] sm:$0xff]
          %v1131 = vld [vmem:[#allocation19] sm:$0xff]
          %v1132 = vld [vmem:[#allocation19 + $0x8] sm:$0xff]
          %v1133 = vld [vmem:[#allocation19 + $0x10] sm:$0xff]
          %v1134 = vld [vmem:[#allocation19 + $0x18] sm:$0xff]
          %v1135 = vld [vmem:[#allocation19 + $0x20] sm:$0xff]
          %v1136 = vld [vmem:[#allocation19 + $0x28] sm:$0xff]
          %v1137 = vld [vmem:[#allocation19 + $0x30] sm:$0xff]
          %v1138 = vld [vmem:[#allocation19 + $0x38] sm:$0xff]
          %v1139 = vld [vmem:[#allocation19 + $0x40] sm:$0xff]
          %v1140 = vld [vmem:[#allocation19 + $0x48] sm:$0xff]
          %v1141 = vld [vmem:[#allocation19 + $0x50] sm:$0xff]
          %v1142 = vld [vmem:[#allocation19 + $0x58] sm:$0xff]
          %v1143 = vld [vmem:[#allocation19 + $0x60] sm:$0xff]
          %v1144 = vld [vmem:[#allocation19 + $0x68] sm:$0xff]
          %v1145 = vld [vmem:[#allocation19 + $0x70] sm:$0xff]
          %v1146 = vld [vmem:[#allocation19 + $0x78] sm:$0xff]
          %1147 = vmatprep.subr.mxu0 0.0
          %1148 = vmatpush1.msra.mxu0 %v1131
          %1149 = vmatprep.subr.mxu0 0.0
          %1150 = vmatpush1.msra.mxu0 %v1132
          %1151 = vmatprep.subr.mxu0 0.0
          %1152 = vmatpush1.msra.mxu0 %v1133
          %1153 = vmatprep.subr.mxu0 0.0
          %1154 = vmatpush1.msra.mxu0 %v1134
          %1155 = vmatprep.subr.mxu0 0.0
          %1156 = vmatpush1.msra.mxu0 %v1135
          %1157 = vmatprep.subr.mxu0 0.0
          %1158 = vmatpush1.msra.mxu0 %v1136
          %1159 = vmatprep.subr.mxu0 0.0
          %1160 = vmatpush1.msra.mxu0 %v1137
          %1161 = vmatprep.subr.mxu0 0.0
          %1162 = vmatpush1.msra.mxu0 %v1138
          %1163 = vmatprep.subr.mxu0 0.0
          %1164 = vmatpush1.msra.mxu0 %v1139
          %1165 = vmatprep.subr.mxu0 0.0
          %1166 = vmatpush1.msra.mxu0 %v1140
          %1167 = vmatprep.subr.mxu0 0.0
          %1168 = vmatpush1.msra.mxu0 %v1141
          %1169 = vmatprep.subr.mxu0 0.0
          %1170 = vmatpush1.msra.mxu0 %v1142
          %1171 = vmatprep.subr.mxu0 0.0
          %1172 = vmatpush1.msra.mxu0 %v1143
          %1173 = vmatprep.subr.mxu0 0.0
          %1174 = vmatpush1.msra.mxu0 %v1144
          %1175 = vmatprep.subr.mxu0 0.0
          %1176 = vmatpush1.msra.mxu0 %v1145
          %1177 = vmatprep.subr.mxu0 0.0
          %1178 = vmatpush1.msra.mxu0 %v1146
          %1179 = vmatprep.subr.mxu0 0.0
          %1180 = vmatpush1.msra.mxu0 0.0
          %1181 = vmatprep.subr.mxu0 0.0
          %1182 = vmatpush1.msra.mxu0 0.0
          %1183 = vmatprep.subr.mxu0 0.0
          %1184 = vmatpush1.msra.mxu0 0.0
          %1185 = vmatprep.subr.mxu0 0.0
          %1186 = vmatpush1.msra.mxu0 0.0
          %1187 = vmatprep.subr.mxu0 0.0
          %1188 = vmatpush1.msra.mxu0 0.0
          %1189 = vmatprep.subr.mxu0 0.0
          %1190 = vmatpush1.msra.mxu0 0.0
          %1191 = vmatprep.subr.mxu0 0.0
          %1192 = vmatpush1.msra.mxu0 0.0
          %1193 = vmatprep.subr.mxu0 0.0
          %1194 = vmatpush1.msra.mxu0 0.0
          %1195 = vmatprep.subr.mxu0 0.0
          %1196 = vmatpush1.msra.mxu0 0.0
          %1197 = vmatprep.subr.mxu0 0.0
          %1198 = vmatpush1.msra.mxu0 0.0
          %1199 = vmatprep.subr.mxu0 0.0
          %1200 = vmatpush1.msra.mxu0 0.0
          %1201 = vmatprep.subr.mxu0 0.0
          %1202 = vmatpush1.msra.mxu0 0.0
          %1203 = vmatprep.subr.mxu0 0.0
          %1204 = vmatpush1.msra.mxu0 0.0
          %1205 = vmatprep.subr.mxu0 0.0
          %1206 = vmatpush1.msra.mxu0 0.0
          %1207 = vmatprep.subr.mxu0 0.0
          %1208 = vmatpush1.msra.mxu0 0.0
          %1209 = vmatprep.subr.mxu0 0.0
          %1210 = vmatpush1.msra.mxu0 0.0
          %1211 = vmatprep.mubr.f32.mxu0 0.0
          %1212 = vmatmul.mubr.f32.gmra.mrb[0].mxu0 %v1114
          %v1213 = vpop.f32.mrb[0].mxu0
          %v1214 = vadd.f32 0.0, %v1213
          %v1215 = vpop.f32.mrb[0].mxu0
          %1216 = vdwg.mxu0
          %1217 = vmatprep.subr.mxu0 0.0
          %1218 = vmatpush1.msra.mxu0 %v1115
          %1219 = vmatprep.subr.mxu0 0.0
          %1220 = vmatpush1.msra.mxu0 %v1116
          %1221 = vmatprep.subr.mxu0 0.0
          %1222 = vmatpush1.msra.mxu0 %v1117
          %1223 = vmatprep.subr.mxu0 0.0
          %1224 = vmatpush1.msra.mxu0 %v1118
          %1225 = vmatprep.subr.mxu0 0.0
          %1226 = vmatpush1.msra.mxu0 %v1119
          %1227 = vmatprep.subr.mxu0 0.0
          %1228 = vmatpush1.msra.mxu0 %v1120
          %1229 = vmatprep.subr.mxu0 0.0
          %1230 = vmatpush1.msra.mxu0 %v1121
          %1231 = vmatprep.subr.mxu0 0.0
          %1232 = vmatpush1.msra.mxu0 %v1122
          %1233 = vmatprep.subr.mxu0 0.0
          %1234 = vmatpush1.msra.mxu0 %v1123
          %1235 = vmatprep.subr.mxu0 0.0
          %1236 = vmatpush1.msra.mxu0 %v1124
          %1237 = vmatprep.subr.mxu0 0.0
          %1238 = vmatpush1.msra.mxu0 %v1125
          %1239 = vmatprep.subr.mxu0 0.0
          %1240 = vmatpush1.msra.mxu0 %v1126
          %1241 = vmatprep.subr.mxu0 0.0
          %1242 = vmatpush1.msra.mxu0 %v1127
          %1243 = vmatprep.subr.mxu0 0.0
          %1244 = vmatpush1.msra.mxu0 %v1128
          %1245 = vmatprep.subr.mxu0 0.0
          %1246 = vmatpush1.msra.mxu0 %v1129
          %1247 = vmatprep.subr.mxu0 0.0
          %1248 = vmatpush1.msra.mxu0 %v1130
          %1249 = vmatprep.subr.mxu0 0.0
          %1250 = vmatpush1.msra.mxu0 0.0
          %1251 = vmatprep.subr.mxu0 0.0
          %1252 = vmatpush1.msra.mxu0 0.0
          %1253 = vmatprep.subr.mxu0 0.0
          %1254 = vmatpush1.msra.mxu0 0.0
          %1255 = vmatprep.subr.mxu0 0.0
          %1256 = vmatpush1.msra.mxu0 0.0
          %1257 = vmatprep.subr.mxu0 0.0
          %1258 = vmatpush1.msra.mxu0 0.0
          %1259 = vmatprep.subr.mxu0 0.0
          %1260 = vmatpush1.msra.mxu0 0.0
          %1261 = vmatprep.subr.mxu0 0.0
          %1262 = vmatpush1.msra.mxu0 0.0
          %1263 = vmatprep.subr.mxu0 0.0
          %1264 = vmatpush1.msra.mxu0 0.0
          %1265 = vmatprep.subr.mxu0 0.0
          %1266 = vmatpush1.msra.mxu0 0.0
          %1267 = vmatprep.subr.mxu0 0.0
          %1268 = vmatpush1.msra.mxu0 0.0
          %1269 = vmatprep.subr.mxu0 0.0
          %1270 = vmatpush1.msra.mxu0 0.0
          %1271 = vmatprep.subr.mxu0 0.0
          %1272 = vmatpush1.msra.mxu0 0.0
          %1273 = vmatprep.subr.mxu0 0.0
          %1274 = vmatpush1.msra.mxu0 0.0
          %1275 = vmatprep.subr.mxu0 0.0
          %1276 = vmatpush1.msra.mxu0 0.0
          %1277 = vmatprep.subr.mxu0 0.0
          %1278 = vmatpush1.msra.mxu0 0.0
          %1279 = vmatprep.subr.mxu0 0.0
          %1280 = vmatpush1.msra.mxu0 0.0
          %1281 = vmatprep.mubr.f32.mxu0 0.0
          %1282 = vmatmul.mubr.f32.gmra.mrb[0].mxu0 %v1113
          %v1283 = vpop.f32.mrb[0].mxu0
          %v1284 = vadd.f32 %v1214, %v1283
          %v1285 = vpop.f32.mrb[0].mxu0
          %1286 = vdwg.mxu0
          %v1287 = vld [vmem:[#allocation20] sm:$0x1]
          %v1289 = vlaneseq
          %v1290 = vshrl.u32 %v1289, 7
          %v1291 = vsub.s32 0, %v1290
          %v1292 = vrot.slane %v1287, %v1291
          %v1294 = vadd.f32 %v1284, %v1292
          %v1295 = vxor.u32 %v1294, 2147483648
          %v1296 = vmul.f32 %v1295, 1.442695
          %v1297 = vpow.pop %v1296
          %v1298 = vadd.f32 %v1297, 1.0
          %v1299 = vrcp.pop %v1298
          %v1300 = vmul.f32 1.0, %v1299
          %v1301 = vmul.f32 %v1294, %v1300
          %v1302 = vld [vmem:[#allocation22] sm:$0xff]
          %v1303 = vld [vmem:[#allocation22 + $0x8] sm:$0xff]
          %v1304 = vld [vmem:[#allocation22 + $0x10] sm:$0xff]
          %v1305 = vld [vmem:[#allocation22 + $0x18] sm:$0xff]
          %v1306 = vld [vmem:[#allocation22 + $0x20] sm:$0xff]
          %v1307 = vld [vmem:[#allocation22 + $0x28] sm:$0xff]
          %v1308 = vld [vmem:[#allocation22 + $0x30] sm:$0xff]
          %v1309 = vld [vmem:[#allocation22 + $0x38] sm:$0xff]
          %v1310 = vld [vmem:[#allocation22 + $0x40] sm:$0xff]
          %v1311 = vld [vmem:[#allocation22 + $0x48] sm:$0xff]
          %v1312 = vld [vmem:[#allocation22 + $0x50] sm:$0xff]
          %v1313 = vld [vmem:[#allocation22 + $0x58] sm:$0xff]
          %v1314 = vld [vmem:[#allocation22 + $0x60] sm:$0xff]
          %v1315 = vld [vmem:[#allocation22 + $0x68] sm:$0xff]
          %v1316 = vld [vmem:[#allocation22 + $0x70] sm:$0xff]
          %v1317 = vld [vmem:[#allocation22 + $0x78] sm:$0xff]
          %v1318 = vld [vmem:[#allocation25] sm:$0x1]
          %v1320 = vlaneseq
          %v1321 = vshrl.u32 %v1320, 7
          %v1322 = vsub.s32 0, %v1321
          %v1323 = vrot.slane %v1318, %v1322
          %1325 = vmatprep.subr.mxu0 0.0
          %1326 = vmatpush1.msra.mxu0 %v1302
          %1327 = vmatprep.subr.mxu0 0.0
          %1328 = vmatpush1.msra.mxu0 %v1303
          %1329 = vmatprep.subr.mxu0 0.0
          %1330 = vmatpush1.msra.mxu0 %v1304
          %1331 = vmatprep.subr.mxu0 0.0
          %1332 = vmatpush1.msra.mxu0 %v1305
          %1333 = vmatprep.subr.mxu0 0.0
          %1334 = vmatpush1.msra.mxu0 %v1306
          %1335 = vmatprep.subr.mxu0 0.0
          %1336 = vmatpush1.msra.mxu0 %v1307
          %1337 = vmatprep.subr.mxu0 0.0
          %1338 = vmatpush1.msra.mxu0 %v1308
          %1339 = vmatprep.subr.mxu0 0.0
          %1340 = vmatpush1.msra.mxu0 %v1309
          %1341 = vmatprep.subr.mxu0 0.0
          %1342 = vmatpush1.msra.mxu0 %v1310
          %1343 = vmatprep.subr.mxu0 0.0
          %1344 = vmatpush1.msra.mxu0 %v1311
          %1345 = vmatprep.subr.mxu0 0.0
          %1346 = vmatpush1.msra.mxu0 %v1312
          %1347 = vmatprep.subr.mxu0 0.0
          %1348 = vmatpush1.msra.mxu0 %v1313
          %1349 = vmatprep.subr.mxu0 0.0
          %1350 = vmatpush1.msra.mxu0 %v1314
          %1351 = vmatprep.subr.mxu0 0.0
          %1352 = vmatpush1.msra.mxu0 %v1315
          %1353 = vmatprep.subr.mxu0 0.0
          %1354 = vmatpush1.msra.mxu0 %v1316
          %1355 = vmatprep.subr.mxu0 0.0
          %1356 = vmatpush1.msra.mxu0 %v1317
          %1357 = vmatprep.subr.mxu0 0.0
          %1358 = vmatpush1.msra.mxu0 0.0
          %1359 = vmatprep.subr.mxu0 0.0
          %1360 = vmatpush1.msra.mxu0 0.0
          %1361 = vmatprep.subr.mxu0 0.0
          %1362 = vmatpush1.msra.mxu0 0.0
          %1363 = vmatprep.subr.mxu0 0.0
          %1364 = vmatpush1.msra.mxu0 0.0
          %1365 = vmatprep.subr.mxu0 0.0
          %1366 = vmatpush1.msra.mxu0 0.0
          %1367 = vmatprep.subr.mxu0 0.0
          %1368 = vmatpush1.msra.mxu0 0.0
          %1369 = vmatprep.subr.mxu0 0.0
          %1370 = vmatpush1.msra.mxu0 0.0
          %1371 = vmatprep.subr.mxu0 0.0
          %1372 = vmatpush1.msra.mxu0 0.0
          %1373 = vmatprep.subr.mxu0 0.0
          %1374 = vmatpush1.msra.mxu0 0.0
          %1375 = vmatprep.subr.mxu0 0.0
          %1376 = vmatpush1.msra.mxu0 0.0
          %1377 = vmatprep.subr.mxu0 0.0
          %1378 = vmatpush1.msra.mxu0 0.0
          %1379 = vmatprep.subr.mxu0 0.0
          %1380 = vmatpush1.msra.mxu0 0.0
          %1381 = vmatprep.subr.mxu0 0.0
          %1382 = vmatpush1.msra.mxu0 0.0
          %1383 = vmatprep.subr.mxu0 0.0
          %1384 = vmatpush1.msra.mxu0 0.0
          %1385 = vmatprep.subr.mxu0 0.0
          %1386 = vmatpush1.msra.mxu0 0.0
          %1387 = vmatprep.subr.mxu0 0.0
          %1388 = vmatpush1.msra.mxu0 0.0
          %1389 = vmatprep.mubr.f32.mxu0 0.0
          %1390 = vmatmul.mubr.f32.gmra.mrb[0].mxu0 %v1301
          %v1391 = vpop.f32.mrb[0].mxu0
          %v1392 = vadd.f32 %v1323, %v1391
          %v1393 = vpop.f32.mrb[0].mxu0
          %1394 = vdwg.mxu0
          %v1395 = vld [vmem:[#allocation23] sm:$0xff]
          %v1396 = vld [vmem:[#allocation23 + $0x8] sm:$0xff]
          %v1397 = vld [vmem:[#allocation23 + $0x10] sm:$0xff]
          %v1398 = vld [vmem:[#allocation23 + $0x18] sm:$0xff]
          %v1399 = vld [vmem:[#allocation23 + $0x20] sm:$0xff]
          %v1400 = vld [vmem:[#allocation23 + $0x28] sm:$0xff]
          %v1401 = vld [vmem:[#allocation23 + $0x30] sm:$0xff]
          %v1402 = vld [vmem:[#allocation23 + $0x38] sm:$0xff]
          %v1403 = vld [vmem:[#allocation23 + $0x40] sm:$0xff]
          %v1404 = vld [vmem:[#allocation23 + $0x48] sm:$0xff]
          %v1405 = vld [vmem:[#allocation23 + $0x50] sm:$0xff]
          %v1406 = vld [vmem:[#allocation23 + $0x58] sm:$0xff]
          %v1407 = vld [vmem:[#allocation23 + $0x60] sm:$0xff]
          %v1408 = vld [vmem:[#allocation23 + $0x68] sm:$0xff]
          %v1409 = vld [vmem:[#allocation23 + $0x70] sm:$0xff]
          %v1410 = vld [vmem:[#allocation23 + $0x78] sm:$0xff]
          %v1411 = vld [vmem:[#allocation26] sm:$0x1]
          %v1413 = vlaneseq
          %v1414 = vshrl.u32 %v1413, 7
          %v1415 = vsub.s32 0, %v1414
          %v1416 = vrot.slane %v1411, %v1415
          %1418 = vmatprep.subr.mxu0 0.0
          %1419 = vmatpush1.msra.mxu0 %v1395
          %1420 = vmatprep.subr.mxu0 0.0
          %1421 = vmatpush1.msra.mxu0 %v1396
          %1422 = vmatprep.subr.mxu0 0.0
          %1423 = vmatpush1.msra.mxu0 %v1397
          %1424 = vmatprep.subr.mxu0 0.0
          %1425 = vmatpush1.msra.mxu0 %v1398
          %1426 = vmatprep.subr.mxu0 0.0
          %1427 = vmatpush1.msra.mxu0 %v1399
          %1428 = vmatprep.subr.mxu0 0.0
          %1429 = vmatpush1.msra.mxu0 %v1400
          %1430 = vmatprep.subr.mxu0 0.0
          %1431 = vmatpush1.msra.mxu0 %v1401
          %1432 = vmatprep.subr.mxu0 0.0
          %1433 = vmatpush1.msra.mxu0 %v1402
          %1434 = vmatprep.subr.mxu0 0.0
          %1435 = vmatpush1.msra.mxu0 %v1403
          %1436 = vmatprep.subr.mxu0 0.0
          %1437 = vmatpush1.msra.mxu0 %v1404
          %1438 = vmatprep.subr.mxu0 0.0
          %1439 = vmatpush1.msra.mxu0 %v1405
          %1440 = vmatprep.subr.mxu0 0.0
          %1441 = vmatpush1.msra.mxu0 %v1406
          %1442 = vmatprep.subr.mxu0 0.0
          %1443 = vmatpush1.msra.mxu0 %v1407
          %1444 = vmatprep.subr.mxu0 0.0
          %1445 = vmatpush1.msra.mxu0 %v1408
          %1446 = vmatprep.subr.mxu0 0.0
          %1447 = vmatpush1.msra.mxu0 %v1409
          %1448 = vmatprep.subr.mxu0 0.0
          %1449 = vmatpush1.msra.mxu0 %v1410
          %1450 = vmatprep.subr.mxu0 0.0
          %1451 = vmatpush1.msra.mxu0 0.0
          %1452 = vmatprep.subr.mxu0 0.0
          %1453 = vmatpush1.msra.mxu0 0.0
          %1454 = vmatprep.subr.mxu0 0.0
          %1455 = vmatpush1.msra.mxu0 0.0
          %1456 = vmatprep.subr.mxu0 0.0
          %1457 = vmatpush1.msra.mxu0 0.0
          %1458 = vmatprep.subr.mxu0 0.0
          %1459 = vmatpush1.msra.mxu0 0.0
          %1460 = vmatprep.subr.mxu0 0.0
          %1461 = vmatpush1.msra.mxu0 0.0
          %1462 = vmatprep.subr.mxu0 0.0
          %1463 = vmatpush1.msra.mxu0 0.0
          %1464 = vmatprep.subr.mxu0 0.0
          %1465 = vmatpush1.msra.mxu0 0.0
          %1466 = vmatprep.subr.mxu0 0.0
          %1467 = vmatpush1.msra.mxu0 0.0
          %1468 = vmatprep.subr.mxu0 0.0
          %1469 = vmatpush1.msra.mxu0 0.0
          %1470 = vmatprep.subr.mxu0 0.0
          %1471 = vmatpush1.msra.mxu0 0.0
          %1472 = vmatprep.subr.mxu0 0.0
          %1473 = vmatpush1.msra.mxu0 0.0
          %1474 = vmatprep.subr.mxu0 0.0
          %1475 = vmatpush1.msra.mxu0 0.0
          %1476 = vmatprep.subr.mxu0 0.0
          %1477 = vmatpush1.msra.mxu0 0.0
          %1478 = vmatprep.subr.mxu0 0.0
          %1479 = vmatpush1.msra.mxu0 0.0
          %1480 = vmatprep.subr.mxu0 0.0
          %1481 = vmatpush1.msra.mxu0 0.0
          %1482 = vmatprep.mubr.f32.mxu0 0.0
          %1483 = vmatmul.mubr.f32.gmra.mrb[0].mxu0 %v1301
          %v1484 = vpop.f32.mrb[0].mxu0
          %v1485 = vadd.f32 %v1416, %v1484
          %v1486 = vpop.f32.mrb[0].mxu0
          %1487 = vdwg.mxu0
          %v1488 = vadd.f32 %v1113, %v1392
          %v1489 = vadd.f32 %v1114, %v1485
          %v1490 = vld [vmem:[#allocation28] sm:$0xff]
          %v1491 = vld [vmem:[#allocation28 + $0x8] sm:$0xff]
          %v1492 = vld [vmem:[#allocation28 + $0x10] sm:$0xff]
          %v1493 = vld [vmem:[#allocation28 + $0x18] sm:$0xff]
          %v1494 = vld [vmem:[#allocation28 + $0x20] sm:$0xff]
          %v1495 = vld [vmem:[#allocation28 + $0x28] sm:$0xff]
          %v1496 = vld [vmem:[#allocation28 + $0x30] sm:$0xff]
          %v1497 = vld [vmem:[#allocation28 + $0x38] sm:$0xff]
          %v1498 = vld [vmem:[#allocation28 + $0x40] sm:$0xff]
          %v1499 = vld [vmem:[#allocation28 + $0x48] sm:$0xff]
          %v1500 = vld [vmem:[#allocation28 + $0x50] sm:$0xff]
          %v1501 = vld [vmem:[#allocation28 + $0x58] sm:$0xff]
          %v1502 = vld [vmem:[#allocation28 + $0x60] sm:$0xff]
          %v1503 = vld [vmem:[#allocation28 + $0x68] sm:$0xff]
          %v1504 = vld [vmem:[#allocation28 + $0x70] sm:$0xff]
          %v1505 = vld [vmem:[#allocation28 + $0x78] sm:$0xff]
          %v1506 = vld [vmem:[#allocation29] sm:$0xff]
          %v1507 = vld [vmem:[#allocation29 + $0x8] sm:$0xff]
          %v1508 = vld [vmem:[#allocation29 + $0x10] sm:$0xff]
          %v1509 = vld [vmem:[#allocation29 + $0x18] sm:$0xff]
          %v1510 = vld [vmem:[#allocation29 + $0x20] sm:$0xff]
          %v1511 = vld [vmem:[#allocation29 + $0x28] sm:$0xff]
          %v1512 = vld [vmem:[#allocation29 + $0x30] sm:$0xff]
          %v1513 = vld [vmem:[#allocation29 + $0x38] sm:$0xff]
          %v1514 = vld [vmem:[#allocation29 + $0x40] sm:$0xff]
          %v1515 = vld [vmem:[#allocation29 + $0x48] sm:$0xff]
          %v1516 = vld [vmem:[#allocation29 + $0x50] sm:$0xff]
          %v1517 = vld [vmem:[#allocation29 + $0x58] sm:$0xff]
          %v1518 = vld [vmem:[#allocation29 + $0x60] sm:$0xff]
          %v1519 = vld [vmem:[#allocation29 + $0x68] sm:$0xff]
          %v1520 = vld [vmem:[#allocation29 + $0x70] sm:$0xff]
          %v1521 = vld [vmem:[#allocation29 + $0x78] sm:$0xff]
          %1522 = vmatprep.subr.mxu0 0.0
          %1523 = vmatpush1.msra.mxu0 %v1506
          %1524 = vmatprep.subr.mxu0 0.0
          %1525 = vmatpush1.msra.mxu0 %v1507
          %1526 = vmatprep.subr.mxu0 0.0
          %1527 = vmatpush1.msra.mxu0 %v1508
          %1528 = vmatprep.subr.mxu0 0.0
          %1529 = vmatpush1.msra.mxu0 %v1509
          %1530 = vmatprep.subr.mxu0 0.0
          %1531 = vmatpush1.msra.mxu0 %v1510
          %1532 = vmatprep.subr.mxu0 0.0
          %1533 = vmatpush1.msra.mxu0 %v1511
          %1534 = vmatprep.subr.mxu0 0.0
          %1535 = vmatpush1.msra.mxu0 %v1512
          %1536 = vmatprep.subr.mxu0 0.0
          %1537 = vmatpush1.msra.mxu0 %v1513
          %1538 = vmatprep.subr.mxu0 0.0
          %1539 = vmatpush1.msra.mxu0 %v1514
          %1540 = vmatprep.subr.mxu0 0.0
          %1541 = vmatpush1.msra.mxu0 %v1515
          %1542 = vmatprep.subr.mxu0 0.0
          %1543 = vmatpush1.msra.mxu0 %v1516
          %1544 = vmatprep.subr.mxu0 0.0
          %1545 = vmatpush1.msra.mxu0 %v1517
          %1546 = vmatprep.subr.mxu0 0.0
          %1547 = vmatpush1.msra.mxu0 %v1518
          %1548 = vmatprep.subr.mxu0 0.0
          %1549 = vmatpush1.msra.mxu0 %v1519
          %1550 = vmatprep.subr.mxu0 0.0
          %1551 = vmatpush1.msra.mxu0 %v1520
          %1552 = vmatprep.subr.mxu0 0.0
          %1553 = vmatpush1.msra.mxu0 %v1521
          %1554 = vmatprep.subr.mxu0 0.0
          %1555 = vmatpush1.msra.mxu0 0.0
          %1556 = vmatprep.subr.mxu0 0.0
          %1557 = vmatpush1.msra.mxu0 0.0
          %1558 = vmatprep.subr.mxu0 0.0
          %1559 = vmatpush1.msra.mxu0 0.0
          %1560 = vmatprep.subr.mxu0 0.0
          %1561 = vmatpush1.msra.mxu0 0.0
          %1562 = vmatprep.subr.mxu0 0.0
          %1563 = vmatpush1.msra.mxu0 0.0
          %1564 = vmatprep.subr.mxu0 0.0
          %1565 = vmatpush1.msra.mxu0 0.0
          %1566 = vmatprep.subr.mxu0 0.0
          %1567 = vmatpush1.msra.mxu0 0.0
          %1568 = vmatprep.subr.mxu0 0.0
          %1569 = vmatpush1.msra.mxu0 0.0
          %1570 = vmatprep.subr.mxu0 0.0
          %1571 = vmatpush1.msra.mxu0 0.0
          %1572 = vmatprep.subr.mxu0 0.0
          %1573 = vmatpush1.msra.mxu0 0.0
          %1574 = vmatprep.subr.mxu0 0.0
          %1575 = vmatpush1.msra.mxu0 0.0
          %1576 = vmatprep.subr.mxu0 0.0
          %1577 = vmatpush1.msra.mxu0 0.0
          %1578 = vmatprep.subr.mxu0 0.0
          %1579 = vmatpush1.msra.mxu0 0.0
          %1580 = vmatprep.subr.mxu0 0.0
          %1581 = vmatpush1.msra.mxu0 0.0
          %1582 = vmatprep.subr.mxu0 0.0
          %1583 = vmatpush1.msra.mxu0 0.0
          %1584 = vmatprep.subr.mxu0 0.0
          %1585 = vmatpush1.msra.mxu0 0.0
          %1586 = vmatprep.mubr.f32.mxu0 0.0
          %1587 = vmatmul.mubr.f32.gmra.mrb[0].mxu0 %v1489
          %v1588 = vpop.f32.mrb[0].mxu0
          %v1589 = vadd.f32 0.0, %v1588
          %v1590 = vpop.f32.mrb[0].mxu0
          %1591 = vdwg.mxu0
          %1592 = vmatprep.subr.mxu0 0.0
          %1593 = vmatpush1.msra.mxu0 %v1490
          %1594 = vmatprep.subr.mxu0 0.0
          %1595 = vmatpush1.msra.mxu0 %v1491
          %1596 = vmatprep.subr.mxu0 0.0
          %1597 = vmatpush1.msra.mxu0 %v1492
          %1598 = vmatprep.subr.mxu0 0.0
          %1599 = vmatpush1.msra.mxu0 %v1493
          %1600 = vmatprep.subr.mxu0 0.0
          %1601 = vmatpush1.msra.mxu0 %v1494
          %1602 = vmatprep.subr.mxu0 0.0
          %1603 = vmatpush1.msra.mxu0 %v1495
          %1604 = vmatprep.subr.mxu0 0.0
          %1605 = vmatpush1.msra.mxu0 %v1496
          %1606 = vmatprep.subr.mxu0 0.0
          %1607 = vmatpush1.msra.mxu0 %v1497
          %1608 = vmatprep.subr.mxu0 0.0
          %1609 = vmatpush1.msra.mxu0 %v1498
          %1610 = vmatprep.subr.mxu0 0.0
          %1611 = vmatpush1.msra.mxu0 %v1499
          %1612 = vmatprep.subr.mxu0 0.0
          %1613 = vmatpush1.msra.mxu0 %v1500
          %1614 = vmatprep.subr.mxu0 0.0
          %1615 = vmatpush1.msra.mxu0 %v1501
          %1616 = vmatprep.subr.mxu0 0.0
          %1617 = vmatpush1.msra.mxu0 %v1502
          %1618 = vmatprep.subr.mxu0 0.0
          %1619 = vmatpush1.msra.mxu0 %v1503
          %1620 = vmatprep.subr.mxu0 0.0
          %1621 = vmatpush1.msra.mxu0 %v1504
          %1622 = vmatprep.subr.mxu0 0.0
          %1623 = vmatpush1.msra.mxu0 %v1505
          %1624 = vmatprep.subr.mxu0 0.0
          %1625 = vmatpush1.msra.mxu0 0.0
          %1626 = vmatprep.subr.mxu0 0.0
          %1627 = vmatpush1.msra.mxu0 0.0
          %1628 = vmatprep.subr.mxu0 0.0
          %1629 = vmatpush1.msra.mxu0 0.0
          %1630 = vmatprep.subr.mxu0 0.0
          %1631 = vmatpush1.msra.mxu0 0.0
          %1632 = vmatprep.subr.mxu0 0.0
          %1633 = vmatpush1.msra.mxu0 0.0
          %1634 = vmatprep.subr.mxu0 0.0
          %1635 = vmatpush1.msra.mxu0 0.0
          %1636 = vmatprep.subr.mxu0 0.0
          %1637 = vmatpush1.msra.mxu0 0.0
          %1638 = vmatprep.subr.mxu0 0.0
          %1639 = vmatpush1.msra.mxu0 0.0
          %1640 = vmatprep.subr.mxu0 0.0
          %1641 = vmatpush1.msra.mxu0 0.0
          %1642 = vmatprep.subr.mxu0 0.0
          %1643 = vmatpush1.msra.mxu0 0.0
          %1644 = vmatprep.subr.mxu0 0.0
          %1645 = vmatpush1.msra.mxu0 0.0
          %1646 = vmatprep.subr.mxu0 0.0
          %1647 = vmatpush1.msra.mxu0 0.0
          %1648 = vmatprep.subr.mxu0 0.0
          %1649 = vmatpush1.msra.mxu0 0.0
          %1650 = vmatprep.subr.mxu0 0.0
          %1651 = vmatpush1.msra.mxu0 0.0
          %1652 = vmatprep.subr.mxu0 0.0
          %1653 = vmatpush1.msra.mxu0 0.0
          %1654 = vmatprep.subr.mxu0 0.0
          %1655 = vmatpush1.msra.mxu0 0.0
          %1656 = vmatprep.mubr.f32.mxu0 0.0
          %1657 = vmatmul.mubr.f32.gmra.mrb[0].mxu0 %v1488
          %v1658 = vpop.f32.mrb[0].mxu0
          %v1659 = vadd.f32 %v1589, %v1658
          %v1660 = vpop.f32.mrb[0].mxu0
          %1661 = vdwg.mxu0
          %v1662 = vld [vmem:[#allocation31] sm:$0x1]
          %v1664 = vlaneseq
          %v1665 = vshrl.u32 %v1664, 7
          %v1666 = vsub.s32 0, %v1665
          %v1667 = vrot.slane %v1662, %v1666
          %v1669 = vadd.f32 %v1659, %v1667
          %1670 = vst [vmem:[#allocation32] sm:$0x3] %v1669
        $region176: #{tpu_custom_call.1} parent=87 // pred_fallthru
          _
        // Predicated region
        $region177: #{tpu_custom_call.1} parent=87 // pred_check
          %p1671 = pneg %p430
        $region178: #{tpu_custom_call.1} parent=87 // pred_check_branch
          %1673 = sbr.rel (%p1671) target = $region180
        $region179: #{tpu_custom_call.1} parent=87 // pred_region
          %s1675 = ssub.s32 32, 32
          %1676 = vsyncadd [#allocation7], %s1675
          %s1678 = sshll.u32 [#allocation32], 4
          %s1679 = int_to_ptr.vmem [resolvable:$true] %s1678
          %1681 = dma.vmem_to_hbm [thread:$0]  %s1679, 32, %s17, [#allocation7]
        $region180: #{tpu_custom_call.1} parent=87 // pred_fallthru
          _
        // Predicated region
        $region181: #{tpu_custom_call.1} parent=87 // pred_check
          %p1682 = pneg %p430
        $region182: #{tpu_custom_call.1} parent=87 // pred_check_branch
          %1684 = sbr.rel (%p1682) target = $region184
        $region183: #{tpu_custom_call.1} parent=87 // pred_region
          %1685 = dma.done [#allocation7], 32
        $region184: #{tpu_custom_call.1} parent=87 // pred_fallthru
          _
      $region88: #{tpu_custom_call.1} parent=5 // pred_fallthru
        _
      %p1686 = scmp.le.s32.totalorder 2, %s33
      // Predicated region
      $region185: #{tpu_custom_call.1} parent=5 // pred_check
        %p1687 = pneg %p1686
      $region186: #{tpu_custom_call.1} parent=5 // pred_check_branch
        %1689 = sbr.rel (%p1687) target = $region188
      $region187: #{tpu_custom_call.1} parent=5 // pred_region
        %s1690 = ssub.s32 %s33, 2
      $region188: #{tpu_custom_call.1} parent=5 // pred_fallthru
        _
    $region6: #{tpu_custom_call.1} parent=1 // loop_footer
      %s37 = sadd.s32 1, %s33
    $region7: #{tpu_custom_call.1} parent=1 // loop_footer_branch
      %32 = sbr.rel target = $region3
    $region8: #{tpu_custom_call.1} parent=1 // loop_exit
      _
    %1691 = vsyncpa [#allocation6], 1
    %s1692 = scalar_lea.sflag [#allocation6], 1
    %1693 = vsyncpa %s1692, 1
    %1694 = vsyncpa [#allocation9], 1
    %1695 = vsyncpa [#allocation12], 1
    %1696 = vsyncpa [#allocation15], 1
    %1697 = vsyncpa [#allocation18], 1
    %1698 = vsyncpa [#allocation21], 1
    %1699 = vsyncpa [#allocation24], 1
    %1700 = vsyncpa [#allocation27], 1
    %1701 = vsyncpa [#allocation30], 1
    %1702 = vsyncpa [#allocation7], 1
    %s1703 = scalar_lea.sflag [#allocation7], 1
    %1704 = vsyncpa %s1703, 1

</llo_original>
